<compile_context>
chip_gen: v7x
topology: tpu7x:2x2x1
jax: 0.10.0
libtpu: 0.0.40
codegen_flags: <defaults>
</compile_context>

<pallas_src>
import math

import jax
import jax.numpy as jnp
from jax.experimental import pallas as pl
from jax.experimental.pallas import tpu as pltpu


# --------------------------------------------------------------------------- #
# Kernels
# --------------------------------------------------------------------------- #
def _lc_kernel_bias(x_ref, w_ref, b_ref, o_ref):
    # x_ref: (n, d_blk, m1), w_ref: (d_blk, m1, m2), b_ref: (d_blk, m2)
    # o_ref: (n, d_blk * m2)   <- lane-dense folded output slab
    n, d_blk, _ = x_ref.shape
    m2 = w_ref.shape[2]
    h = jnp.einsum("njk,jkm->njm", x_ref[...], w_ref[...],
                   preferred_element_type=jnp.float32)
    h = h + b_ref[...].astype(jnp.float32)[None, :, :]
    o_ref[...] = h.reshape(n, d_blk * m2).astype(o_ref.dtype)


def _lc_kernel_nobias(x_ref, w_ref, o_ref):
    n, d_blk, _ = x_ref.shape
    m2 = w_ref.shape[2]
    h = jnp.einsum("njk,jkm->njm", x_ref[...], w_ref[...],
                   preferred_element_type=jnp.float32)
    o_ref[...] = h.reshape(n, d_blk * m2).astype(o_ref.dtype)


# --------------------------------------------------------------------------- #
# Block-size selection
# --------------------------------------------------------------------------- #
def _ceil_to(x, m):
    return ((x + m - 1) // m) * m


def _block_vmem_bytes(n, c, m1, m2, itemsize, with_bias):
    """Conservative padded VMEM footprint of one grid step (x2 double-buffer)."""
    x_b = n * _ceil_to(c, 8) * _ceil_to(m1, 128) * itemsize
    w_b = c * _ceil_to(m1, 8) * _ceil_to(m2, 128) * itemsize
    o_b = _ceil_to(n, 8) * _ceil_to(c * m2, 128) * itemsize
    b_b = _ceil_to(c, 8) * _ceil_to(m2, 128) * itemsize if with_bias else 0
    return 2 * (x_b + w_b + o_b + b_b)


def _choose_d_block(n, d, m1, m2, itemsize, with_bias, budget_bytes=24 << 20):
    """Pick how many nodes to process per grid step.

    Legal D_BLK values satisfy the (8,128) block rules for every BlockSpec:
      * D_BLK == d                      (block equals the full node axis), or
      * D_BLK % 8 == 0 and (D_BLK * m2) % 128 == 0   (node-blocked, lane-dense out)
    Among legal values fitting the VMEM budget we prefer one that splits the
    grid into >= 2 steps (so v7x's 2 TensorCores both get work), else d itself.
    """
    def legal(c):
        return c == d or (c % 8 == 0 and (c * m2) % 128 == 0)

    cands = [c for c in range(1, d + 1) if d % c == 0 and legal(c)]
    fitting = [c for c in cands
               if _block_vmem_bytes(n, c, m1, m2, itemsize, with_bias)
               <= budget_bytes]
    if fitting:
        split = [c for c in fitting if c < d]
        return max(split) if split else max(fitting)
    return min(cands)  # nothing fits the budget -> smallest legal block


# --------------------------------------------------------------------------- #
# Wrapper
# --------------------------------------------------------------------------- #
def locally_connected(x, weight, bias=None):
    """x: [n, d, m1], weight: [d, m1, m2], bias: [d, m2] or None -> [n, d, m2]."""
    n, d, m1 = x.shape
    d_w, m1_w, m2 = weight.shape
    assert d == d_w and m1 == m1_w
    if bias is not None:
        assert bias.shape == (d, m2)

    itemsize = jnp.dtype(x.dtype).itemsize
    d_blk = _choose_d_block(n, d, m1, m2, itemsize, bias is not None)
    grid = (d // d_blk,)

    in_specs = [
        # native [n, d, m1] layout, node axis blocked -> no wrapper transpose
        pl.BlockSpec((n, d_blk, m1), lambda j: (0, j, 0)),
        pl.BlockSpec((d_blk, m1, m2), lambda j: (j, 0, 0)),
    ]
    args = [x, weight]
    kernel = _lc_kernel_nobias
    if bias is not None:
        in_specs.append(pl.BlockSpec((d_blk, m2), lambda j: (j, 0)))
        args.append(bias)
        kernel = _lc_kernel_bias

    # Lane-dense output: [n, d*m2] slab, reshaped back to [n, d, m2] for free.
    out_specs = pl.BlockSpec((n, d_blk * m2), lambda j: (0, j))

    bytes_accessed = itemsize * (
        n * d * m1 + d * m1 * m2 + n * d * m2
        + (d * m2 if bias is not None else 0)
    )
    cost = pl.CostEstimate(
        flops=2 * n * d * m1 * m2,
        transcendentals=0,
        bytes_accessed=bytes_accessed,
    )

    out2d = pl.pallas_call(
        kernel,
        out_shape=jax.ShapeDtypeStruct((n, d * m2), x.dtype),
        grid_spec=pltpu.PrefetchScalarGridSpec(
            num_scalar_prefetch=0,
            grid=grid,
            in_specs=in_specs,
            out_specs=out_specs,
        ),
        compiler_params=pltpu.CompilerParams(
            dimension_semantics=("parallel",),
            vmem_limit_bytes=32 * 1024 * 1024,
        ),
        cost_estimate=cost,
    )(*args)

    return out2d.reshape(n, d, m2)


# --------------------------------------------------------------------------- #
# Reference & test
# --------------------------------------------------------------------------- #
def _reference(x, weight, bias=None):
    # matches torch.matmul(input.unsqueeze(2), weight.unsqueeze(0)).squeeze(2) (+ bias)
    h = jnp.einsum("ndi,dio->ndo", x, weight)
    if bias is not None:
        h = h + bias[None, :, :]
    return h


if __name__ == "__main__":
    key = jax.random.PRNGKey(0)

    def make_case(n, d, m1, m2, k):
        kx, kw, kb = jax.random.split(k, 3)
        # init mirrors reset_parameters(): U(-sqrt(1/m1), sqrt(1/m1))
        bound = math.sqrt(1.0 / m1)
        x = jax.random.normal(kx, (n, d, m1), dtype=jnp.float32)
        w = jax.random.uniform(kw, (d, m1, m2), minval=-bound, maxval=bound,
                               dtype=jnp.float32)
        b = jax.random.uniform(kb, (d, m2), minval=-bound, maxval=bound,
                               dtype=jnp.float32)
        return x, w, b

    k1, k2 = jax.random.split(key)

    # Case 1: tiny module-like shapes (d_blk == d, single grid step).
    n, d, m1, m2 = 8, 4, 32, 16
    x, w, b = make_case(n, d, m1, m2, k1)

    out_b = jax.block_until_ready(locally_connected(x, w, b))       # bias=True
    ref_b = _reference(x, w, b)
    assert out_b.shape == (n, d, m2)
    assert jnp.allclose(out_b, ref_b, atol=1e-4, rtol=1e-4)

    out_nb = jax.block_until_ready(locally_connected(x, w, None))   # bias=False (default)
    ref_nb = _reference(x, w, None)
    assert jnp.allclose(out_nb, ref_nb, atol=1e-4, rtol=1e-4)

    # Case 2: exercises node-blocking (d_blk=8, grid=(2,), 128-wide dense out slabs).
    x2, w2, b2 = make_case(16, 16, 32, 16, k2)
    out2 = jax.block_until_ready(locally_connected(x2, w2, b2))
    ref2 = _reference(x2, w2, b2)
    assert jnp.allclose(out2, ref2, atol=1e-4, rtol=1e-4)

    print("KERNEL_OK")
</pallas_src>

<mosaic_0001>
module attributes {stable_mosaic.version = 11 : i64} {
  func.func @_lc_kernel_bias(%arg0: i32, %arg1: memref<8x4x32xf32, #tpu.memory_space<vmem>>, %arg2: memref<4x32x16xf32, #tpu.memory_space<vmem>>, %arg3: memref<4x16xf32, #tpu.memory_space<vmem>>, %arg4: memref<8x64xf32, #tpu.memory_space<vmem>>) attributes {dimension_semantics = [#tpu.dimension_semantics<parallel>], iteration_bounds = array<i64: 1>, scalar_prefetch = 0 : i64, scratch_operands = 0 : i64, tpu.core_type = #tpu.core_type<tc>, window_params = [{transform_indices = @transform_0, window_bounds = array<i64: 8, 4, 32>}, {transform_indices = @transform_1, window_bounds = array<i64: 4, 32, 16>}, {transform_indices = @transform_2, window_bounds = array<i64: 4, 16>}, {transform_indices = @transform_3, window_bounds = array<i64: 8, 64>}]} {
    %c0 = arith.constant 0 : index
    %c0_0 = arith.constant 0 : index
    %c0_1 = arith.constant 0 : index
    %0 = vector.load %arg1[%c0, %c0_0, %c0_1] : memref<8x4x32xf32, #tpu.memory_space<vmem>>, vector<8x4x32xf32>
    %c0_2 = arith.constant 0 : index
    %c0_3 = arith.constant 0 : index
    %c0_4 = arith.constant 0 : index
    %1 = vector.load %arg2[%c0_2, %c0_3, %c0_4] : memref<4x32x16xf32, #tpu.memory_space<vmem>>, vector<4x32x16xf32>
    "tpu.trace_start"() <{level = 10 : i32, message = "njk,jkm->njm"}> : () -> ()
    %cst = arith.constant dense<0.000000e+00> : vector<4x16x8xf32>
    %2 = tpu.matmul %1, %0, %cst {dimension_numbers = #tpu.dot_dimension_numbers<[1], [2], [2], [0], [0, 0, 0, 2, 1, 0], [0], [1]>} : vector<4x32x16xf32>, vector<8x4x32xf32>, vector<4x16x8xf32> -> vector<4x16x8xf32>
    %3 = tpu.transpose %2, [2, 0, 1] : vector<4x16x8xf32> -> vector<8x4x16xf32>
    "tpu.trace_stop"() : () -> ()
    %c0_5 = arith.constant 0 : index
    %c0_6 = arith.constant 0 : index
    %4 = vector.load %arg3[%c0_5, %c0_6] : memref<4x16xf32, #tpu.memory_space<vmem>>, vector<4x16xf32>
    %5 = vector.shape_cast %4 : vector<4x16xf32> to vector<1x4x16xf32>
    %6 = vector.broadcast %5 : vector<1x4x16xf32> to vector<8x4x16xf32>
    %7 = arith.addf %3, %6 : vector<8x4x16xf32>
    %8 = vector.shape_cast %7 : vector<8x4x16xf32> to vector<8x64xf32>
    %c0_7 = arith.constant 0 : index
    %c0_8 = arith.constant 0 : index
    %9 = vector.load %arg4[%c0_7, %c0_8] : memref<8x64xf32, #tpu.memory_space<vmem>>, vector<8x64xf32>
    tpu.vector_store %arg4[%c0_7, %c0_8], %8 {strides = array<i32>} : memref<8x64xf32, #tpu.memory_space<vmem>>, vector<8x64xf32>,
    return
  }
  func.func @transform_0(%arg0: i32) -> (i32, i32, i32) {
    %c0_i32 = arith.constant 0 : i32
    %c0_i32_0 = arith.constant 0 : i32
    %c0_i32_1 = arith.constant 0 : i32
    return %c0_i32, %arg0, %c0_i32_0 : i32, i32, i32
  }
  func.func @transform_1(%arg0: i32) -> (i32, i32, i32) {
    %c0_i32 = arith.constant 0 : i32
    %c0_i32_0 = arith.constant 0 : i32
    %c0_i32_1 = arith.constant 0 : i32
    return %arg0, %c0_i32, %c0_i32_0 : i32, i32, i32
  }
  func.func @transform_2(%arg0: i32) -> (i32, i32) {
    %c0_i32 = arith.constant 0 : i32
    %c0_i32_0 = arith.constant 0 : i32
    return %arg0, %c0_i32 : i32, i32
  }
  func.func @transform_3(%arg0: i32) -> (i32, i32) {
    %c0_i32 = arith.constant 0 : i32
    %c0_i32_0 = arith.constant 0 : i32
    return %c0_i32, %arg0 : i32, i32
  }
}

</mosaic_0001>

<llo_original>
// kernel: tpu_custom_call.1
$region0: #{tpu_custom_call.1}
  #allocation0 [shape = 'u32[]', space=smem, size = 0x4, offset = 0x4, fixed_abs, tag = 'smem constant byte address 0x4 - core index']
  #allocation1 [shape = 'u32[144,128]{1,0:T(1,128)}', space=vmem, size = 0x12000, scoped, tag = 'internal scratch']
  %s0 = inlined_call_operand.vmem [shape: f32[8,4,32], index: 0, kind: input, shape index: {}]
  %s1 = inlined_call_operand.vmem [shape: f32[4,32,16], index: 1, kind: input, shape index: {}]
  %s2 = inlined_call_operand.vmem [shape: f32[4,16], index: 2, kind: input, shape index: {}]
  %s3 = inlined_call_operand.hbm [shape: f32[8,64], index: 3, kind: output, shape index: {}]
  %s4 = sld [smem:[#allocation0]]
  $region22: #{tpu_custom_call.1} parent=0
    _
  %s6 = ssub.s32 1, %s4
  %s7 = scalar_select 0, %s6, %s4
  $region1: #{tpu_custom_call.1} parent=0
    #allocation2 [shape = 'u8[4096]{0}', space=vmem, size = 0x1000, scoped, tag = 'output window, operand 0, single buffered']
    #allocation3 [shape = 's32[1]{0}', space=sflag, size = 0x4, scoped, tag = 'scoped memory for tpu_custom_call.1']
    %8 = vsyncpa [#allocation3], 0
    // Predicated region
    $region2: #{tpu_custom_call.1} parent=1 // pred_check
      _
    $region3: #{tpu_custom_call.1} parent=1 // pred_check_branch
      %10 = sbr.rel (0) target = $region5
    $region4: #{tpu_custom_call.1} parent=1 // pred_region
      _
    $region5: #{tpu_custom_call.1} parent=1 // pred_fallthru
      _
    // Predicated region
    $region6: #{tpu_custom_call.1} parent=1 // pred_check
      _
    $region7: #{tpu_custom_call.1} parent=1 // pred_check_branch
      %12 = sbr.rel (0) target = $region9
    $region8: #{tpu_custom_call.1} parent=1 // pred_region
      _
    $region9: #{tpu_custom_call.1} parent=1 // pred_fallthru
      _
    // Predicated region
    $region10: #{tpu_custom_call.1} parent=1 // pred_check
      _
    $region11: #{tpu_custom_call.1} parent=1 // pred_check_branch
      %14 = sbr.rel (0) target = $region13
    $region12: #{tpu_custom_call.1} parent=1 // pred_region
      _
    $region13: #{tpu_custom_call.1} parent=1 // pred_fallthru
      _
    %v15 = vld [vmem:[%s0] sm:$0xf]
    %v16 = vld [vmem:[%s0 + $0x4] sm:$0xf]
    %v17 = vld [vmem:[%s0 + $0x8] sm:$0xf]
    %v18 = vld [vmem:[%s0 + $0xc] sm:$0xf]
    %v19 = vld [vmem:[%s0 + $0x10] sm:$0xf]
    %v20 = vld [vmem:[%s0 + $0x14] sm:$0xf]
    %v21 = vld [vmem:[%s0 + $0x18] sm:$0xf]
    %v22 = vld [vmem:[%s0 + $0x1c] sm:$0xf]
    %v23 = vld [vmem:[%s1] sm:$0xff]
    %v24 = vld [vmem:[%s1 + $0x8] sm:$0xff]
    %v25 = vld [vmem:[%s1 + $0x10] sm:$0xff]
    %v26 = vld [vmem:[%s1 + $0x18] sm:$0xff]
    %v27 = vld [vmem:[%s1 + $0x20] sm:$0xff]
    %v28 = vld [vmem:[%s1 + $0x28] sm:$0xff]
    %v29 = vld [vmem:[%s1 + $0x30] sm:$0xff]
    %v30 = vld [vmem:[%s1 + $0x38] sm:$0xff]
    %v31 = vld [vmem:[%s1 + $0x40] sm:$0xff]
    %v32 = vld [vmem:[%s1 + $0x48] sm:$0xff]
    %v33 = vld [vmem:[%s1 + $0x50] sm:$0xff]
    %v34 = vld [vmem:[%s1 + $0x58] sm:$0xff]
    %v35 = vld [vmem:[%s1 + $0x60] sm:$0xff]
    %v36 = vld [vmem:[%s1 + $0x68] sm:$0xff]
    %v37 = vld [vmem:[%s1 + $0x70] sm:$0xff]
    %v38 = vld [vmem:[%s1 + $0x78] sm:$0xff]
    %39 = vxpose.xlu0.b32.start [1/16] %v15, 128
    %40 = vxpose.xlu0.b32.cont [2/16] 0.0, 128
    %41 = vxpose.xlu0.b32.cont [3/16] 0.0, 128
    %42 = vxpose.xlu0.b32.cont [4/16] 0.0, 128
    %43 = vxpose.xlu0.b32.cont [5/16] 0.0, 128
    %44 = vxpose.xlu0.b32.cont [6/16] 0.0, 128
    %45 = vxpose.xlu0.b32.cont [7/16] 0.0, 128
    %46 = vxpose.xlu0.b32.cont [8/16] 0.0, 128
    %47 = vxpose.xlu0.b32.cont [9/16] 0.0, 128
    %48 = vxpose.xlu0.b32.cont [10/16] 0.0, 128
    %49 = vxpose.xlu0.b32.cont [11/16] 0.0, 128
    %50 = vxpose.xlu0.b32.cont [12/16] 0.0, 128
    %51 = vxpose.xlu0.b32.cont [13/16] 0.0, 128
    %52 = vxpose.xlu0.b32.cont [14/16] 0.0, 128
    %53 = vxpose.xlu0.b32.cont [15/16] 0.0, 128
    %54 = vxpose.xlu0.b32.end [16/16] 0.0, 128
    %v55 = vpop.trf.xlu0
    %v56 = vpop.trf.xlu0
    %v57 = vpop.trf.xlu0
    %v58 = vpop.trf.xlu0
    %v59 = vpop.trf.xlu0
    %v60 = vpop.trf.xlu0
    %v61 = vpop.trf.xlu0
    %v62 = vpop.trf.xlu0
    %v63 = vpop.trf.xlu0
    %v64 = vpop.trf.xlu0
    %v65 = vpop.trf.xlu0
    %v66 = vpop.trf.xlu0
    %v67 = vpop.trf.xlu0
    %v68 = vpop.trf.xlu0
    %v69 = vpop.trf.xlu0
    %v70 = vpop.trf.xlu0
    %71 = vxpose.xlu0.b32.start [1/16] %v16, 128
    %72 = vxpose.xlu0.b32.cont [2/16] 0.0, 128
    %73 = vxpose.xlu0.b32.cont [3/16] 0.0, 128
    %74 = vxpose.xlu0.b32.cont [4/16] 0.0, 128
    %75 = vxpose.xlu0.b32.cont [5/16] 0.0, 128
    %76 = vxpose.xlu0.b32.cont [6/16] 0.0, 128
    %77 = vxpose.xlu0.b32.cont [7/16] 0.0, 128
    %78 = vxpose.xlu0.b32.cont [8/16] 0.0, 128
    %79 = vxpose.xlu0.b32.cont [9/16] 0.0, 128
    %80 = vxpose.xlu0.b32.cont [10/16] 0.0, 128
    %81 = vxpose.xlu0.b32.cont [11/16] 0.0, 128
    %82 = vxpose.xlu0.b32.cont [12/16] 0.0, 128
    %83 = vxpose.xlu0.b32.cont [13/16] 0.0, 128
    %84 = vxpose.xlu0.b32.cont [14/16] 0.0, 128
    %85 = vxpose.xlu0.b32.cont [15/16] 0.0, 128
    %86 = vxpose.xlu0.b32.end [16/16] 0.0, 128
    %v87 = vpop.trf.xlu0
    %v88 = vpop.trf.xlu0
    %v89 = vpop.trf.xlu0
    %v90 = vpop.trf.xlu0
    %v91 = vpop.trf.xlu0
    %v92 = vpop.trf.xlu0
    %v93 = vpop.trf.xlu0
    %v94 = vpop.trf.xlu0
    %v95 = vpop.trf.xlu0
    %v96 = vpop.trf.xlu0
    %v97 = vpop.trf.xlu0
    %v98 = vpop.trf.xlu0
    %v99 = vpop.trf.xlu0
    %v100 = vpop.trf.xlu0
    %v101 = vpop.trf.xlu0
    %v102 = vpop.trf.xlu0
    %103 = vxpose.xlu0.b32.start [1/16] %v17, 128
    %104 = vxpose.xlu0.b32.cont [2/16] 0.0, 128
    %105 = vxpose.xlu0.b32.cont [3/16] 0.0, 128
    %106 = vxpose.xlu0.b32.cont [4/16] 0.0, 128
    %107 = vxpose.xlu0.b32.cont [5/16] 0.0, 128
    %108 = vxpose.xlu0.b32.cont [6/16] 0.0, 128
    %109 = vxpose.xlu0.b32.cont [7/16] 0.0, 128
    %110 = vxpose.xlu0.b32.cont [8/16] 0.0, 128
    %111 = vxpose.xlu0.b32.cont [9/16] 0.0, 128
    %112 = vxpose.xlu0.b32.cont [10/16] 0.0, 128
    %113 = vxpose.xlu0.b32.cont [11/16] 0.0, 128
    %114 = vxpose.xlu0.b32.cont [12/16] 0.0, 128
    %115 = vxpose.xlu0.b32.cont [13/16] 0.0, 128
    %116 = vxpose.xlu0.b32.cont [14/16] 0.0, 128
    %117 = vxpose.xlu0.b32.cont [15/16] 0.0, 128
    %118 = vxpose.xlu0.b32.end [16/16] 0.0, 128
    %v119 = vpop.trf.xlu0
    %v120 = vpop.trf.xlu0
    %v121 = vpop.trf.xlu0
    %v122 = vpop.trf.xlu0
    %v123 = vpop.trf.xlu0
    %v124 = vpop.trf.xlu0
    %v125 = vpop.trf.xlu0
    %v126 = vpop.trf.xlu0
    %v127 = vpop.trf.xlu0
    %v128 = vpop.trf.xlu0
    %v129 = vpop.trf.xlu0
    %v130 = vpop.trf.xlu0
    %v131 = vpop.trf.xlu0
    %v132 = vpop.trf.xlu0
    %v133 = vpop.trf.xlu0
    %v134 = vpop.trf.xlu0
    %135 = vxpose.xlu0.b32.start [1/16] %v18, 128
    %136 = vxpose.xlu0.b32.cont [2/16] 0.0, 128
    %137 = vxpose.xlu0.b32.cont [3/16] 0.0, 128
    %138 = vxpose.xlu0.b32.cont [4/16] 0.0, 128
    %139 = vxpose.xlu0.b32.cont [5/16] 0.0, 128
    %140 = vxpose.xlu0.b32.cont [6/16] 0.0, 128
    %141 = vxpose.xlu0.b32.cont [7/16] 0.0, 128
    %142 = vxpose.xlu0.b32.cont [8/16] 0.0, 128
    %143 = vxpose.xlu0.b32.cont [9/16] 0.0, 128
    %144 = vxpose.xlu0.b32.cont [10/16] 0.0, 128
    %145 = vxpose.xlu0.b32.cont [11/16] 0.0, 128
    %146 = vxpose.xlu0.b32.cont [12/16] 0.0, 128
    %147 = vxpose.xlu0.b32.cont [13/16] 0.0, 128
    %148 = vxpose.xlu0.b32.cont [14/16] 0.0, 128
    %149 = vxpose.xlu0.b32.cont [15/16] 0.0, 128
    %150 = vxpose.xlu0.b32.end [16/16] 0.0, 128
    %v151 = vpop.trf.xlu0
    %v152 = vpop.trf.xlu0
    %v153 = vpop.trf.xlu0
    %v154 = vpop.trf.xlu0
    %v155 = vpop.trf.xlu0
    %v156 = vpop.trf.xlu0
    %v157 = vpop.trf.xlu0
    %v158 = vpop.trf.xlu0
    %v159 = vpop.trf.xlu0
    %v160 = vpop.trf.xlu0
    %v161 = vpop.trf.xlu0
    %v162 = vpop.trf.xlu0
    %v163 = vpop.trf.xlu0
    %v164 = vpop.trf.xlu0
    %v165 = vpop.trf.xlu0
    %v166 = vpop.trf.xlu0
    %167 = vxpose.xlu0.b32.start [1/16] %v19, 128
    %168 = vxpose.xlu0.b32.cont [2/16] 0.0, 128
    %169 = vxpose.xlu0.b32.cont [3/16] 0.0, 128
    %170 = vxpose.xlu0.b32.cont [4/16] 0.0, 128
    %171 = vxpose.xlu0.b32.cont [5/16] 0.0, 128
    %172 = vxpose.xlu0.b32.cont [6/16] 0.0, 128
    %173 = vxpose.xlu0.b32.cont [7/16] 0.0, 128
    %174 = vxpose.xlu0.b32.cont [8/16] 0.0, 128
    %175 = vxpose.xlu0.b32.cont [9/16] 0.0, 128
    %176 = vxpose.xlu0.b32.cont [10/16] 0.0, 128
    %177 = vxpose.xlu0.b32.cont [11/16] 0.0, 128
    %178 = vxpose.xlu0.b32.cont [12/16] 0.0, 128
    %179 = vxpose.xlu0.b32.cont [13/16] 0.0, 128
    %180 = vxpose.xlu0.b32.cont [14/16] 0.0, 128
    %181 = vxpose.xlu0.b32.cont [15/16] 0.0, 128
    %182 = vxpose.xlu0.b32.end [16/16] 0.0, 128
    %v183 = vpop.trf.xlu0
    %v184 = vpop.trf.xlu0
    %v185 = vpop.trf.xlu0
    %v186 = vpop.trf.xlu0
    %v187 = vpop.trf.xlu0
    %v188 = vpop.trf.xlu0
    %v189 = vpop.trf.xlu0
    %v190 = vpop.trf.xlu0
    %v191 = vpop.trf.xlu0
    %v192 = vpop.trf.xlu0
    %v193 = vpop.trf.xlu0
    %v194 = vpop.trf.xlu0
    %v195 = vpop.trf.xlu0
    %v196 = vpop.trf.xlu0
    %v197 = vpop.trf.xlu0
    %v198 = vpop.trf.xlu0
    %199 = vxpose.xlu0.b32.start [1/16] %v20, 128
    %200 = vxpose.xlu0.b32.cont [2/16] 0.0, 128
    %201 = vxpose.xlu0.b32.cont [3/16] 0.0, 128
    %202 = vxpose.xlu0.b32.cont [4/16] 0.0, 128
    %203 = vxpose.xlu0.b32.cont [5/16] 0.0, 128
    %204 = vxpose.xlu0.b32.cont [6/16] 0.0, 128
    %205 = vxpose.xlu0.b32.cont [7/16] 0.0, 128
    %206 = vxpose.xlu0.b32.cont [8/16] 0.0, 128
    %207 = vxpose.xlu0.b32.cont [9/16] 0.0, 128
    %208 = vxpose.xlu0.b32.cont [10/16] 0.0, 128
    %209 = vxpose.xlu0.b32.cont [11/16] 0.0, 128
    %210 = vxpose.xlu0.b32.cont [12/16] 0.0, 128
    %211 = vxpose.xlu0.b32.cont [13/16] 0.0, 128
    %212 = vxpose.xlu0.b32.cont [14/16] 0.0, 128
    %213 = vxpose.xlu0.b32.cont [15/16] 0.0, 128
    %214 = vxpose.xlu0.b32.end [16/16] 0.0, 128
    %v215 = vpop.trf.xlu0
    %v216 = vpop.trf.xlu0
    %v217 = vpop.trf.xlu0
    %v218 = vpop.trf.xlu0
    %v219 = vpop.trf.xlu0
    %v220 = vpop.trf.xlu0
    %v221 = vpop.trf.xlu0
    %v222 = vpop.trf.xlu0
    %v223 = vpop.trf.xlu0
    %v224 = vpop.trf.xlu0
    %v225 = vpop.trf.xlu0
    %v226 = vpop.trf.xlu0
    %v227 = vpop.trf.xlu0
    %v228 = vpop.trf.xlu0
    %v229 = vpop.trf.xlu0
    %v230 = vpop.trf.xlu0
    %231 = vxpose.xlu0.b32.start [1/16] %v21, 128
    %232 = vxpose.xlu0.b32.cont [2/16] 0.0, 128
    %233 = vxpose.xlu0.b32.cont [3/16] 0.0, 128
    %234 = vxpose.xlu0.b32.cont [4/16] 0.0, 128
    %235 = vxpose.xlu0.b32.cont [5/16] 0.0, 128
    %236 = vxpose.xlu0.b32.cont [6/16] 0.0, 128
    %237 = vxpose.xlu0.b32.cont [7/16] 0.0, 128
    %238 = vxpose.xlu0.b32.cont [8/16] 0.0, 128
    %239 = vxpose.xlu0.b32.cont [9/16] 0.0, 128
    %240 = vxpose.xlu0.b32.cont [10/16] 0.0, 128
    %241 = vxpose.xlu0.b32.cont [11/16] 0.0, 128
    %242 = vxpose.xlu0.b32.cont [12/16] 0.0, 128
    %243 = vxpose.xlu0.b32.cont [13/16] 0.0, 128
    %244 = vxpose.xlu0.b32.cont [14/16] 0.0, 128
    %245 = vxpose.xlu0.b32.cont [15/16] 0.0, 128
    %246 = vxpose.xlu0.b32.end [16/16] 0.0, 128
    %v247 = vpop.trf.xlu0
    %v248 = vpop.trf.xlu0
    %v249 = vpop.trf.xlu0
    %v250 = vpop.trf.xlu0
    %v251 = vpop.trf.xlu0
    %v252 = vpop.trf.xlu0
    %v253 = vpop.trf.xlu0
    %v254 = vpop.trf.xlu0
    %v255 = vpop.trf.xlu0
    %v256 = vpop.trf.xlu0
    %v257 = vpop.trf.xlu0
    %v258 = vpop.trf.xlu0
    %v259 = vpop.trf.xlu0
    %v260 = vpop.trf.xlu0
    %v261 = vpop.trf.xlu0
    %v262 = vpop.trf.xlu0
    %263 = vxpose.xlu0.b32.start [1/16] %v22, 128
    %264 = vxpose.xlu0.b32.cont [2/16] 0.0, 128
    %265 = vxpose.xlu0.b32.cont [3/16] 0.0, 128
    %266 = vxpose.xlu0.b32.cont [4/16] 0.0, 128
    %267 = vxpose.xlu0.b32.cont [5/16] 0.0, 128
    %268 = vxpose.xlu0.b32.cont [6/16] 0.0, 128
    %269 = vxpose.xlu0.b32.cont [7/16] 0.0, 128
    %270 = vxpose.xlu0.b32.cont [8/16] 0.0, 128
    %271 = vxpose.xlu0.b32.cont [9/16] 0.0, 128
    %272 = vxpose.xlu0.b32.cont [10/16] 0.0, 128
    %273 = vxpose.xlu0.b32.cont [11/16] 0.0, 128
    %274 = vxpose.xlu0.b32.cont [12/16] 0.0, 128
    %275 = vxpose.xlu0.b32.cont [13/16] 0.0, 128
    %276 = vxpose.xlu0.b32.cont [14/16] 0.0, 128
    %277 = vxpose.xlu0.b32.cont [15/16] 0.0, 128
    %278 = vxpose.xlu0.b32.end [16/16] 0.0, 128
    %v279 = vpop.trf.xlu0
    %v280 = vpop.trf.xlu0
    %v281 = vpop.trf.xlu0
    %v282 = vpop.trf.xlu0
    %v283 = vpop.trf.xlu0
    %v284 = vpop.trf.xlu0
    %v285 = vpop.trf.xlu0
    %v286 = vpop.trf.xlu0
    %v287 = vpop.trf.xlu0
    %v288 = vpop.trf.xlu0
    %v289 = vpop.trf.xlu0
    %v290 = vpop.trf.xlu0
    %v291 = vpop.trf.xlu0
    %v292 = vpop.trf.xlu0
    %v293 = vpop.trf.xlu0
    %v294 = vpop.trf.xlu0
    %v295 = vcombine.low %v55, %v119
    %v296 = vcombine.high %v55, %v119
    %v298 = vunpack.c.l.s4 1983009808
    %v299 = vunpack.c.0.s8 %v298
    %v300 = vlaneseq
    %v301 = vshrl.u32 %v300, 7
    %v302 = vsub.s32 %v299, %v301
    %v303 = vrot.slane %v295, %v302
    %v305 = vunpack.c.l.s4 1983009808
    %v306 = vunpack.c.0.s8 %v305
    %v307 = vlaneseq
    %v308 = vshrl.u32 %v307, 7
    %v309 = vsub.s32 %v306, %v308
    %v310 = vrot.slane %v296, %v309
    %v311 = vcombine.low %v87, %v151
    %v312 = vcombine.high %v87, %v151
    %v314 = vunpack.c.l.s4 1983009808
    %v315 = vunpack.c.0.s8 %v314
    %v316 = vlaneseq
    %v317 = vshrl.u32 %v316, 7
    %v318 = vsub.s32 %v315, %v317
    %v319 = vrot.slane %v311, %v318
    %v321 = vunpack.c.l.s4 1983009808
    %v322 = vunpack.c.0.s8 %v321
    %v323 = vlaneseq
    %v324 = vshrl.u32 %v323, 7
    %v325 = vsub.s32 %v322, %v324
    %v326 = vrot.slane %v312, %v325
    %v327 = vcombine.low %v183, %v247
    %v328 = vcombine.high %v183, %v247
    %v330 = vunpack.c.l.s4 1983009808
    %v331 = vunpack.c.0.s8 %v330
    %v332 = vlaneseq
    %v333 = vshrl.u32 %v332, 7
    %v334 = vsub.s32 %v331, %v333
    %v335 = vrot.slane %v327, %v334
    %v337 = vunpack.c.l.s4 1983009808
    %v338 = vunpack.c.0.s8 %v337
    %v339 = vlaneseq
    %v340 = vshrl.u32 %v339, 7
    %v341 = vsub.s32 %v338, %v340
    %v342 = vrot.slane %v328, %v341
    %v343 = vcombine.low %v215, %v279
    %v344 = vcombine.high %v215, %v279
    %v346 = vunpack.c.l.s4 1983009808
    %v347 = vunpack.c.0.s8 %v346
    %v348 = vlaneseq
    %v349 = vshrl.u32 %v348, 7
    %v350 = vsub.s32 %v347, %v349
    %v351 = vrot.slane %v343, %v350
    %v353 = vunpack.c.l.s4 1983009808
    %v354 = vunpack.c.0.s8 %v353
    %v355 = vlaneseq
    %v356 = vshrl.u32 %v355, 7
    %v357 = vsub.s32 %v354, %v356
    %v358 = vrot.slane %v344, %v357
    %v359 = vcombine.low %v303, %v319
    %v360 = vcombine.high %v303, %v319
    %v362 = vunpack.c.l.s4 1934713408
    %v363 = vunpack.c.0.s8 %v362
    %v364 = vlaneseq
    %v365 = vshrl.u32 %v364, 7
    %v366 = vsub.s32 %v363, %v365
    %v367 = vrot.slane %v359, %v366
    %v369 = vunpack.c.l.s4 1934713408
    %v370 = vunpack.c.0.s8 %v369
    %v371 = vlaneseq
    %v372 = vshrl.u32 %v371, 7
    %v373 = vsub.s32 %v370, %v372
    %v374 = vrot.slane %v360, %v373
    %v375 = vcombine.low %v310, %v326
    %v376 = vcombine.high %v310, %v326
    %v378 = vunpack.c.l.s4 1934713408
    %v379 = vunpack.c.0.s8 %v378
    %v380 = vlaneseq
    %v381 = vshrl.u32 %v380, 7
    %v382 = vsub.s32 %v379, %v381
    %v383 = vrot.slane %v375, %v382
    %v385 = vunpack.c.l.s4 1934713408
    %v386 = vunpack.c.0.s8 %v385
    %v387 = vlaneseq
    %v388 = vshrl.u32 %v387, 7
    %v389 = vsub.s32 %v386, %v388
    %v390 = vrot.slane %v376, %v389
    %v391 = vcombine.low %v335, %v351
    %v392 = vcombine.high %v335, %v351
    %v394 = vunpack.c.l.s4 1934713408
    %v395 = vunpack.c.0.s8 %v394
    %v396 = vlaneseq
    %v397 = vshrl.u32 %v396, 7
    %v398 = vsub.s32 %v395, %v397
    %v399 = vrot.slane %v391, %v398
    %v401 = vunpack.c.l.s4 1934713408
    %v402 = vunpack.c.0.s8 %v401
    %v403 = vlaneseq
    %v404 = vshrl.u32 %v403, 7
    %v405 = vsub.s32 %v402, %v404
    %v406 = vrot.slane %v392, %v405
    %v407 = vcombine.low %v342, %v358
    %v408 = vcombine.high %v342, %v358
    %v410 = vunpack.c.l.s4 1934713408
    %v411 = vunpack.c.0.s8 %v410
    %v412 = vlaneseq
    %v413 = vshrl.u32 %v412, 7
    %v414 = vsub.s32 %v411, %v413
    %v415 = vrot.slane %v407, %v414
    %v417 = vunpack.c.l.s4 1934713408
    %v418 = vunpack.c.0.s8 %v417
    %v419 = vlaneseq
    %v420 = vshrl.u32 %v419, 7
    %v421 = vsub.s32 %v418, %v420
    %v422 = vrot.slane %v408, %v421
    %v423 = vcombine.low %v367, %v399
    %v424 = vcombine.high %v367, %v399
    %v425 = vcombine.low %v374, %v406
    %v426 = vcombine.high %v374, %v406
    %v427 = vcombine.low %v383, %v415
    %v428 = vcombine.high %v383, %v415
    %v429 = vcombine.low %v390, %v422
    %v430 = vcombine.high %v390, %v422
    %v431 = vcombine.low %v56, %v120
    %v432 = vcombine.high %v56, %v120
    %v434 = vunpack.c.l.s4 1983009808
    %v435 = vunpack.c.0.s8 %v434
    %v436 = vlaneseq
    %v437 = vshrl.u32 %v436, 7
    %v438 = vsub.s32 %v435, %v437
    %v439 = vrot.slane %v431, %v438
    %v441 = vunpack.c.l.s4 1983009808
    %v442 = vunpack.c.0.s8 %v441
    %v443 = vlaneseq
    %v444 = vshrl.u32 %v443, 7
    %v445 = vsub.s32 %v442, %v444
    %v446 = vrot.slane %v432, %v445
    %v447 = vcombine.low %v88, %v152
    %v448 = vcombine.high %v88, %v152
    %v450 = vunpack.c.l.s4 1983009808
    %v451 = vunpack.c.0.s8 %v450
    %v452 = vlaneseq
    %v453 = vshrl.u32 %v452, 7
    %v454 = vsub.s32 %v451, %v453
    %v455 = vrot.slane %v447, %v454
    %v457 = vunpack.c.l.s4 1983009808
    %v458 = vunpack.c.0.s8 %v457
    %v459 = vlaneseq
    %v460 = vshrl.u32 %v459, 7
    %v461 = vsub.s32 %v458, %v460
    %v462 = vrot.slane %v448, %v461
    %v463 = vcombine.low %v184, %v248
    %v464 = vcombine.high %v184, %v248
    %v466 = vunpack.c.l.s4 1983009808
    %v467 = vunpack.c.0.s8 %v466
    %v468 = vlaneseq
    %v469 = vshrl.u32 %v468, 7
    %v470 = vsub.s32 %v467, %v469
    %v471 = vrot.slane %v463, %v470
    %v473 = vunpack.c.l.s4 1983009808
    %v474 = vunpack.c.0.s8 %v473
    %v475 = vlaneseq
    %v476 = vshrl.u32 %v475, 7
    %v477 = vsub.s32 %v474, %v476
    %v478 = vrot.slane %v464, %v477
    %v479 = vcombine.low %v216, %v280
    %v480 = vcombine.high %v216, %v280
    %v482 = vunpack.c.l.s4 1983009808
    %v483 = vunpack.c.0.s8 %v482
    %v484 = vlaneseq
    %v485 = vshrl.u32 %v484, 7
    %v486 = vsub.s32 %v483, %v485
    %v487 = vrot.slane %v479, %v486
    %v489 = vunpack.c.l.s4 1983009808
    %v490 = vunpack.c.0.s8 %v489
    %v491 = vlaneseq
    %v492 = vshrl.u32 %v491, 7
    %v493 = vsub.s32 %v490, %v492
    %v494 = vrot.slane %v480, %v493
    %v495 = vcombine.low %v439, %v455
    %v496 = vcombine.high %v439, %v455
    %v498 = vunpack.c.l.s4 1934713408
    %v499 = vunpack.c.0.s8 %v498
    %v500 = vlaneseq
    %v501 = vshrl.u32 %v500, 7
    %v502 = vsub.s32 %v499, %v501
    %v503 = vrot.slane %v495, %v502
    %v505 = vunpack.c.l.s4 1934713408
    %v506 = vunpack.c.0.s8 %v505
    %v507 = vlaneseq
    %v508 = vshrl.u32 %v507, 7
    %v509 = vsub.s32 %v506, %v508
    %v510 = vrot.slane %v496, %v509
    %v511 = vcombine.low %v446, %v462
    %v512 = vcombine.high %v446, %v462
    %v514 = vunpack.c.l.s4 1934713408
    %v515 = vunpack.c.0.s8 %v514
    %v516 = vlaneseq
    %v517 = vshrl.u32 %v516, 7
    %v518 = vsub.s32 %v515, %v517
    %v519 = vrot.slane %v511, %v518
    %v521 = vunpack.c.l.s4 1934713408
    %v522 = vunpack.c.0.s8 %v521
    %v523 = vlaneseq
    %v524 = vshrl.u32 %v523, 7
    %v525 = vsub.s32 %v522, %v524
    %v526 = vrot.slane %v512, %v525
    %v527 = vcombine.low %v471, %v487
    %v528 = vcombine.high %v471, %v487
    %v530 = vunpack.c.l.s4 1934713408
    %v531 = vunpack.c.0.s8 %v530
    %v532 = vlaneseq
    %v533 = vshrl.u32 %v532, 7
    %v534 = vsub.s32 %v531, %v533
    %v535 = vrot.slane %v527, %v534
    %v537 = vunpack.c.l.s4 1934713408
    %v538 = vunpack.c.0.s8 %v537
    %v539 = vlaneseq
    %v540 = vshrl.u32 %v539, 7
    %v541 = vsub.s32 %v538, %v540
    %v542 = vrot.slane %v528, %v541
    %v543 = vcombine.low %v478, %v494
    %v544 = vcombine.high %v478, %v494
    %v546 = vunpack.c.l.s4 1934713408
    %v547 = vunpack.c.0.s8 %v546
    %v548 = vlaneseq
    %v549 = vshrl.u32 %v548, 7
    %v550 = vsub.s32 %v547, %v549
    %v551 = vrot.slane %v543, %v550
    %v553 = vunpack.c.l.s4 1934713408
    %v554 = vunpack.c.0.s8 %v553
    %v555 = vlaneseq
    %v556 = vshrl.u32 %v555, 7
    %v557 = vsub.s32 %v554, %v556
    %v558 = vrot.slane %v544, %v557
    %v559 = vcombine.low %v503, %v535
    %v560 = vcombine.high %v503, %v535
    %v561 = vcombine.low %v510, %v542
    %v562 = vcombine.high %v510, %v542
    %v563 = vcombine.low %v519, %v551
    %v564 = vcombine.high %v519, %v551
    %v565 = vcombine.low %v526, %v558
    %v566 = vcombine.high %v526, %v558
    %v567 = vcombine.low %v57, %v121
    %v568 = vcombine.high %v57, %v121
    %v570 = vunpack.c.l.s4 1983009808
    %v571 = vunpack.c.0.s8 %v570
    %v572 = vlaneseq
    %v573 = vshrl.u32 %v572, 7
    %v574 = vsub.s32 %v571, %v573
    %v575 = vrot.slane %v567, %v574
    %v577 = vunpack.c.l.s4 1983009808
    %v578 = vunpack.c.0.s8 %v577
    %v579 = vlaneseq
    %v580 = vshrl.u32 %v579, 7
    %v581 = vsub.s32 %v578, %v580
    %v582 = vrot.slane %v568, %v581
    %v583 = vcombine.low %v89, %v153
    %v584 = vcombine.high %v89, %v153
    %v586 = vunpack.c.l.s4 1983009808
    %v587 = vunpack.c.0.s8 %v586
    %v588 = vlaneseq
    %v589 = vshrl.u32 %v588, 7
    %v590 = vsub.s32 %v587, %v589
    %v591 = vrot.slane %v583, %v590
    %v593 = vunpack.c.l.s4 1983009808
    %v594 = vunpack.c.0.s8 %v593
    %v595 = vlaneseq
    %v596 = vshrl.u32 %v595, 7
    %v597 = vsub.s32 %v594, %v596
    %v598 = vrot.slane %v584, %v597
    %v599 = vcombine.low %v185, %v249
    %v600 = vcombine.high %v185, %v249
    %v602 = vunpack.c.l.s4 1983009808
    %v603 = vunpack.c.0.s8 %v602
    %v604 = vlaneseq
    %v605 = vshrl.u32 %v604, 7
    %v606 = vsub.s32 %v603, %v605
    %v607 = vrot.slane %v599, %v606
    %v609 = vunpack.c.l.s4 1983009808
    %v610 = vunpack.c.0.s8 %v609
    %v611 = vlaneseq
    %v612 = vshrl.u32 %v611, 7
    %v613 = vsub.s32 %v610, %v612
    %v614 = vrot.slane %v600, %v613
    %v615 = vcombine.low %v217, %v281
    %v616 = vcombine.high %v217, %v281
    %v618 = vunpack.c.l.s4 1983009808
    %v619 = vunpack.c.0.s8 %v618
    %v620 = vlaneseq
    %v621 = vshrl.u32 %v620, 7
    %v622 = vsub.s32 %v619, %v621
    %v623 = vrot.slane %v615, %v622
    %v625 = vunpack.c.l.s4 1983009808
    %v626 = vunpack.c.0.s8 %v625
    %v627 = vlaneseq
    %v628 = vshrl.u32 %v627, 7
    %v629 = vsub.s32 %v626, %v628
    %v630 = vrot.slane %v616, %v629
    %v631 = vcombine.low %v575, %v591
    %v632 = vcombine.high %v575, %v591
    %v634 = vunpack.c.l.s4 1934713408
    %v635 = vunpack.c.0.s8 %v634
    %v636 = vlaneseq
    %v637 = vshrl.u32 %v636, 7
    %v638 = vsub.s32 %v635, %v637
    %v639 = vrot.slane %v631, %v638
    %v641 = vunpack.c.l.s4 1934713408
    %v642 = vunpack.c.0.s8 %v641
    %v643 = vlaneseq
    %v644 = vshrl.u32 %v643, 7
    %v645 = vsub.s32 %v642, %v644
    %v646 = vrot.slane %v632, %v645
    %v647 = vcombine.low %v582, %v598
    %v648 = vcombine.high %v582, %v598
    %v650 = vunpack.c.l.s4 1934713408
    %v651 = vunpack.c.0.s8 %v650
    %v652 = vlaneseq
    %v653 = vshrl.u32 %v652, 7
    %v654 = vsub.s32 %v651, %v653
    %v655 = vrot.slane %v647, %v654
    %v657 = vunpack.c.l.s4 1934713408
    %v658 = vunpack.c.0.s8 %v657
    %v659 = vlaneseq
    %v660 = vshrl.u32 %v659, 7
    %v661 = vsub.s32 %v658, %v660
    %v662 = vrot.slane %v648, %v661
    %v663 = vcombine.low %v607, %v623
    %v664 = vcombine.high %v607, %v623
    %v666 = vunpack.c.l.s4 1934713408
    %v667 = vunpack.c.0.s8 %v666
    %v668 = vlaneseq
    %v669 = vshrl.u32 %v668, 7
    %v670 = vsub.s32 %v667, %v669
    %v671 = vrot.slane %v663, %v670
    %v673 = vunpack.c.l.s4 1934713408
    %v674 = vunpack.c.0.s8 %v673
    %v675 = vlaneseq
    %v676 = vshrl.u32 %v675, 7
    %v677 = vsub.s32 %v674, %v676
    %v678 = vrot.slane %v664, %v677
    %v679 = vcombine.low %v614, %v630
    %v680 = vcombine.high %v614, %v630
    %v682 = vunpack.c.l.s4 1934713408
    %v683 = vunpack.c.0.s8 %v682
    %v684 = vlaneseq
    %v685 = vshrl.u32 %v684, 7
    %v686 = vsub.s32 %v683, %v685
    %v687 = vrot.slane %v679, %v686
    %v689 = vunpack.c.l.s4 1934713408
    %v690 = vunpack.c.0.s8 %v689
    %v691 = vlaneseq
    %v692 = vshrl.u32 %v691, 7
    %v693 = vsub.s32 %v690, %v692
    %v694 = vrot.slane %v680, %v693
    %v695 = vcombine.low %v639, %v671
    %v696 = vcombine.high %v639, %v671
    %v697 = vcombine.low %v646, %v678
    %v698 = vcombine.high %v646, %v678
    %v699 = vcombine.low %v655, %v687
    %v700 = vcombine.high %v655, %v687
    %v701 = vcombine.low %v662, %v694
    %v702 = vcombine.high %v662, %v694
    %v703 = vcombine.low %v58, %v122
    %v704 = vcombine.high %v58, %v122
    %v706 = vunpack.c.l.s4 1983009808
    %v707 = vunpack.c.0.s8 %v706
    %v708 = vlaneseq
    %v709 = vshrl.u32 %v708, 7
    %v710 = vsub.s32 %v707, %v709
    %v711 = vrot.slane %v703, %v710
    %v713 = vunpack.c.l.s4 1983009808
    %v714 = vunpack.c.0.s8 %v713
    %v715 = vlaneseq
    %v716 = vshrl.u32 %v715, 7
    %v717 = vsub.s32 %v714, %v716
    %v718 = vrot.slane %v704, %v717
    %v719 = vcombine.low %v90, %v154
    %v720 = vcombine.high %v90, %v154
    %v722 = vunpack.c.l.s4 1983009808
    %v723 = vunpack.c.0.s8 %v722
    %v724 = vlaneseq
    %v725 = vshrl.u32 %v724, 7
    %v726 = vsub.s32 %v723, %v725
    %v727 = vrot.slane %v719, %v726
    %v729 = vunpack.c.l.s4 1983009808
    %v730 = vunpack.c.0.s8 %v729
    %v731 = vlaneseq
    %v732 = vshrl.u32 %v731, 7
    %v733 = vsub.s32 %v730, %v732
    %v734 = vrot.slane %v720, %v733
    %v735 = vcombine.low %v186, %v250
    %v736 = vcombine.high %v186, %v250
    %v738 = vunpack.c.l.s4 1983009808
    %v739 = vunpack.c.0.s8 %v738
    %v740 = vlaneseq
    %v741 = vshrl.u32 %v740, 7
    %v742 = vsub.s32 %v739, %v741
    %v743 = vrot.slane %v735, %v742
    %v745 = vunpack.c.l.s4 1983009808
    %v746 = vunpack.c.0.s8 %v745
    %v747 = vlaneseq
    %v748 = vshrl.u32 %v747, 7
    %v749 = vsub.s32 %v746, %v748
    %v750 = vrot.slane %v736, %v749
    %v751 = vcombine.low %v218, %v282
    %v752 = vcombine.high %v218, %v282
    %v754 = vunpack.c.l.s4 1983009808
    %v755 = vunpack.c.0.s8 %v754
    %v756 = vlaneseq
    %v757 = vshrl.u32 %v756, 7
    %v758 = vsub.s32 %v755, %v757
    %v759 = vrot.slane %v751, %v758
    %v761 = vunpack.c.l.s4 1983009808
    %v762 = vunpack.c.0.s8 %v761
    %v763 = vlaneseq
    %v764 = vshrl.u32 %v763, 7
    %v765 = vsub.s32 %v762, %v764
    %v766 = vrot.slane %v752, %v765
    %v767 = vcombine.low %v711, %v727
    %v768 = vcombine.high %v711, %v727
    %v770 = vunpack.c.l.s4 1934713408
    %v771 = vunpack.c.0.s8 %v770
    %v772 = vlaneseq
    %v773 = vshrl.u32 %v772, 7
    %v774 = vsub.s32 %v771, %v773
    %v775 = vrot.slane %v767, %v774
    %v777 = vunpack.c.l.s4 1934713408
    %v778 = vunpack.c.0.s8 %v777
    %v779 = vlaneseq
    %v780 = vshrl.u32 %v779, 7
    %v781 = vsub.s32 %v778, %v780
    %v782 = vrot.slane %v768, %v781
    %v783 = vcombine.low %v718, %v734
    %v784 = vcombine.high %v718, %v734
    %v786 = vunpack.c.l.s4 1934713408
    %v787 = vunpack.c.0.s8 %v786
    %v788 = vlaneseq
    %v789 = vshrl.u32 %v788, 7
    %v790 = vsub.s32 %v787, %v789
    %v791 = vrot.slane %v783, %v790
    %v793 = vunpack.c.l.s4 1934713408
    %v794 = vunpack.c.0.s8 %v793
    %v795 = vlaneseq
    %v796 = vshrl.u32 %v795, 7
    %v797 = vsub.s32 %v794, %v796
    %v798 = vrot.slane %v784, %v797
    %v799 = vcombine.low %v743, %v759
    %v800 = vcombine.high %v743, %v759
    %v802 = vunpack.c.l.s4 1934713408
    %v803 = vunpack.c.0.s8 %v802
    %v804 = vlaneseq
    %v805 = vshrl.u32 %v804, 7
    %v806 = vsub.s32 %v803, %v805
    %v807 = vrot.slane %v799, %v806
    %v809 = vunpack.c.l.s4 1934713408
    %v810 = vunpack.c.0.s8 %v809
    %v811 = vlaneseq
    %v812 = vshrl.u32 %v811, 7
    %v813 = vsub.s32 %v810, %v812
    %v814 = vrot.slane %v800, %v813
    %v815 = vcombine.low %v750, %v766
    %v816 = vcombine.high %v750, %v766
    %v818 = vunpack.c.l.s4 1934713408
    %v819 = vunpack.c.0.s8 %v818
    %v820 = vlaneseq
    %v821 = vshrl.u32 %v820, 7
    %v822 = vsub.s32 %v819, %v821
    %v823 = vrot.slane %v815, %v822
    %v825 = vunpack.c.l.s4 1934713408
    %v826 = vunpack.c.0.s8 %v825
    %v827 = vlaneseq
    %v828 = vshrl.u32 %v827, 7
    %v829 = vsub.s32 %v826, %v828
    %v830 = vrot.slane %v816, %v829
    %v831 = vcombine.low %v775, %v807
    %v832 = vcombine.high %v775, %v807
    %v833 = vcombine.low %v782, %v814
    %v834 = vcombine.high %v782, %v814
    %v835 = vcombine.low %v791, %v823
    %v836 = vcombine.high %v791, %v823
    %v837 = vcombine.low %v798, %v830
    %v838 = vcombine.high %v798, %v830
    %839 = vxpose.xlu0.b32.start [1/16] %v423, 128
    %840 = vxpose.xlu0.b32.cont [2/16] 0.0, 128
    %841 = vxpose.xlu0.b32.cont [3/16] 0.0, 128
    %842 = vxpose.xlu0.b32.cont [4/16] 0.0, 128
    %843 = vxpose.xlu0.b32.cont [5/16] 0.0, 128
    %844 = vxpose.xlu0.b32.cont [6/16] 0.0, 128
    %845 = vxpose.xlu0.b32.cont [7/16] 0.0, 128
    %846 = vxpose.xlu0.b32.cont [8/16] 0.0, 128
    %847 = vxpose.xlu0.b32.cont [9/16] 0.0, 128
    %848 = vxpose.xlu0.b32.cont [10/16] 0.0, 128
    %849 = vxpose.xlu0.b32.cont [11/16] 0.0, 128
    %850 = vxpose.xlu0.b32.cont [12/16] 0.0, 128
    %851 = vxpose.xlu0.b32.cont [13/16] 0.0, 128
    %852 = vxpose.xlu0.b32.cont [14/16] 0.0, 128
    %853 = vxpose.xlu0.b32.cont [15/16] 0.0, 128
    %854 = vxpose.xlu0.b32.end [16/16] 0.0, 128
    %v855 = vpop.trf.xlu0
    %v856 = vpop.trf.xlu0
    %v857 = vpop.trf.xlu0
    %v858 = vpop.trf.xlu0
    %v859 = vpop.trf.xlu0
    %v860 = vpop.trf.xlu0
    %v861 = vpop.trf.xlu0
    %v862 = vpop.trf.xlu0
    %v863 = vpop.trf.xlu0
    %v864 = vpop.trf.xlu0
    %v865 = vpop.trf.xlu0
    %v866 = vpop.trf.xlu0
    %v867 = vpop.trf.xlu0
    %v868 = vpop.trf.xlu0
    %v869 = vpop.trf.xlu0
    %v870 = vpop.trf.xlu0
    %871 = vxpose.xlu0.b32.start [1/16] %v424, 128
    %872 = vxpose.xlu0.b32.cont [2/16] 0.0, 128
    %873 = vxpose.xlu0.b32.cont [3/16] 0.0, 128
    %874 = vxpose.xlu0.b32.cont [4/16] 0.0, 128
    %875 = vxpose.xlu0.b32.cont [5/16] 0.0, 128
    %876 = vxpose.xlu0.b32.cont [6/16] 0.0, 128
    %877 = vxpose.xlu0.b32.cont [7/16] 0.0, 128
    %878 = vxpose.xlu0.b32.cont [8/16] 0.0, 128
    %879 = vxpose.xlu0.b32.cont [9/16] 0.0, 128
    %880 = vxpose.xlu0.b32.cont [10/16] 0.0, 128
    %881 = vxpose.xlu0.b32.cont [11/16] 0.0, 128
    %882 = vxpose.xlu0.b32.cont [12/16] 0.0, 128
    %883 = vxpose.xlu0.b32.cont [13/16] 0.0, 128
    %884 = vxpose.xlu0.b32.cont [14/16] 0.0, 128
    %885 = vxpose.xlu0.b32.cont [15/16] 0.0, 128
    %886 = vxpose.xlu0.b32.end [16/16] 0.0, 128
    %v887 = vpop.trf.xlu0
    %v888 = vpop.trf.xlu0
    %v889 = vpop.trf.xlu0
    %v890 = vpop.trf.xlu0
    %v891 = vpop.trf.xlu0
    %v892 = vpop.trf.xlu0
    %v893 = vpop.trf.xlu0
    %v894 = vpop.trf.xlu0
    %v895 = vpop.trf.xlu0
    %v896 = vpop.trf.xlu0
    %v897 = vpop.trf.xlu0
    %v898 = vpop.trf.xlu0
    %v899 = vpop.trf.xlu0
    %v900 = vpop.trf.xlu0
    %v901 = vpop.trf.xlu0
    %v902 = vpop.trf.xlu0
    %903 = vxpose.xlu0.b32.start [1/16] %v425, 128
    %904 = vxpose.xlu0.b32.cont [2/16] 0.0, 128
    %905 = vxpose.xlu0.b32.cont [3/16] 0.0, 128
    %906 = vxpose.xlu0.b32.cont [4/16] 0.0, 128
    %907 = vxpose.xlu0.b32.cont [5/16] 0.0, 128
    %908 = vxpose.xlu0.b32.cont [6/16] 0.0, 128
    %909 = vxpose.xlu0.b32.cont [7/16] 0.0, 128
    %910 = vxpose.xlu0.b32.cont [8/16] 0.0, 128
    %911 = vxpose.xlu0.b32.cont [9/16] 0.0, 128
    %912 = vxpose.xlu0.b32.cont [10/16] 0.0, 128
    %913 = vxpose.xlu0.b32.cont [11/16] 0.0, 128
    %914 = vxpose.xlu0.b32.cont [12/16] 0.0, 128
    %915 = vxpose.xlu0.b32.cont [13/16] 0.0, 128
    %916 = vxpose.xlu0.b32.cont [14/16] 0.0, 128
    %917 = vxpose.xlu0.b32.cont [15/16] 0.0, 128
    %918 = vxpose.xlu0.b32.end [16/16] 0.0, 128
    %v919 = vpop.trf.xlu0
    %v920 = vpop.trf.xlu0
    %v921 = vpop.trf.xlu0
    %v922 = vpop.trf.xlu0
    %v923 = vpop.trf.xlu0
    %v924 = vpop.trf.xlu0
    %v925 = vpop.trf.xlu0
    %v926 = vpop.trf.xlu0
    %v927 = vpop.trf.xlu0
    %v928 = vpop.trf.xlu0
    %v929 = vpop.trf.xlu0
    %v930 = vpop.trf.xlu0
    %v931 = vpop.trf.xlu0
    %v932 = vpop.trf.xlu0
    %v933 = vpop.trf.xlu0
    %v934 = vpop.trf.xlu0
    %935 = vxpose.xlu0.b32.start [1/16] %v426, 128
    %936 = vxpose.xlu0.b32.cont [2/16] 0.0, 128
    %937 = vxpose.xlu0.b32.cont [3/16] 0.0, 128
    %938 = vxpose.xlu0.b32.cont [4/16] 0.0, 128
    %939 = vxpose.xlu0.b32.cont [5/16] 0.0, 128
    %940 = vxpose.xlu0.b32.cont [6/16] 0.0, 128
    %941 = vxpose.xlu0.b32.cont [7/16] 0.0, 128
    %942 = vxpose.xlu0.b32.cont [8/16] 0.0, 128
    %943 = vxpose.xlu0.b32.cont [9/16] 0.0, 128
    %944 = vxpose.xlu0.b32.cont [10/16] 0.0, 128
    %945 = vxpose.xlu0.b32.cont [11/16] 0.0, 128
    %946 = vxpose.xlu0.b32.cont [12/16] 0.0, 128
    %947 = vxpose.xlu0.b32.cont [13/16] 0.0, 128
    %948 = vxpose.xlu0.b32.cont [14/16] 0.0, 128
    %949 = vxpose.xlu0.b32.cont [15/16] 0.0, 128
    %950 = vxpose.xlu0.b32.end [16/16] 0.0, 128
    %v951 = vpop.trf.xlu0
    %v952 = vpop.trf.xlu0
    %v953 = vpop.trf.xlu0
    %v954 = vpop.trf.xlu0
    %v955 = vpop.trf.xlu0
    %v956 = vpop.trf.xlu0
    %v957 = vpop.trf.xlu0
    %v958 = vpop.trf.xlu0
    %v959 = vpop.trf.xlu0
    %v960 = vpop.trf.xlu0
    %v961 = vpop.trf.xlu0
    %v962 = vpop.trf.xlu0
    %v963 = vpop.trf.xlu0
    %v964 = vpop.trf.xlu0
    %v965 = vpop.trf.xlu0
    %v966 = vpop.trf.xlu0
    %967 = vxpose.xlu0.b32.start [1/16] %v427, 128
    %968 = vxpose.xlu0.b32.cont [2/16] 0.0, 128
    %969 = vxpose.xlu0.b32.cont [3/16] 0.0, 128
    %970 = vxpose.xlu0.b32.cont [4/16] 0.0, 128
    %971 = vxpose.xlu0.b32.cont [5/16] 0.0, 128
    %972 = vxpose.xlu0.b32.cont [6/16] 0.0, 128
    %973 = vxpose.xlu0.b32.cont [7/16] 0.0, 128
    %974 = vxpose.xlu0.b32.cont [8/16] 0.0, 128
    %975 = vxpose.xlu0.b32.cont [9/16] 0.0, 128
    %976 = vxpose.xlu0.b32.cont [10/16] 0.0, 128
    %977 = vxpose.xlu0.b32.cont [11/16] 0.0, 128
    %978 = vxpose.xlu0.b32.cont [12/16] 0.0, 128
    %979 = vxpose.xlu0.b32.cont [13/16] 0.0, 128
    %980 = vxpose.xlu0.b32.cont [14/16] 0.0, 128
    %981 = vxpose.xlu0.b32.cont [15/16] 0.0, 128
    %982 = vxpose.xlu0.b32.end [16/16] 0.0, 128
    %v983 = vpop.trf.xlu0
    %v984 = vpop.trf.xlu0
    %v985 = vpop.trf.xlu0
    %v986 = vpop.trf.xlu0
    %v987 = vpop.trf.xlu0
    %v988 = vpop.trf.xlu0
    %v989 = vpop.trf.xlu0
    %v990 = vpop.trf.xlu0
    %v991 = vpop.trf.xlu0
    %v992 = vpop.trf.xlu0
    %v993 = vpop.trf.xlu0
    %v994 = vpop.trf.xlu0
    %v995 = vpop.trf.xlu0
    %v996 = vpop.trf.xlu0
    %v997 = vpop.trf.xlu0
    %v998 = vpop.trf.xlu0
    %999 = vxpose.xlu0.b32.start [1/16] %v428, 128
    %1000 = vxpose.xlu0.b32.cont [2/16] 0.0, 128
    %1001 = vxpose.xlu0.b32.cont [3/16] 0.0, 128
    %1002 = vxpose.xlu0.b32.cont [4/16] 0.0, 128
    %1003 = vxpose.xlu0.b32.cont [5/16] 0.0, 128
    %1004 = vxpose.xlu0.b32.cont [6/16] 0.0, 128
    %1005 = vxpose.xlu0.b32.cont [7/16] 0.0, 128
    %1006 = vxpose.xlu0.b32.cont [8/16] 0.0, 128
    %1007 = vxpose.xlu0.b32.cont [9/16] 0.0, 128
    %1008 = vxpose.xlu0.b32.cont [10/16] 0.0, 128
    %1009 = vxpose.xlu0.b32.cont [11/16] 0.0, 128
    %1010 = vxpose.xlu0.b32.cont [12/16] 0.0, 128
    %1011 = vxpose.xlu0.b32.cont [13/16] 0.0, 128
    %1012 = vxpose.xlu0.b32.cont [14/16] 0.0, 128
    %1013 = vxpose.xlu0.b32.cont [15/16] 0.0, 128
    %1014 = vxpose.xlu0.b32.end [16/16] 0.0, 128
    %v1015 = vpop.trf.xlu0
    %v1016 = vpop.trf.xlu0
    %v1017 = vpop.trf.xlu0
    %v1018 = vpop.trf.xlu0
    %v1019 = vpop.trf.xlu0
    %v1020 = vpop.trf.xlu0
    %v1021 = vpop.trf.xlu0
    %v1022 = vpop.trf.xlu0
    %v1023 = vpop.trf.xlu0
    %v1024 = vpop.trf.xlu0
    %v1025 = vpop.trf.xlu0
    %v1026 = vpop.trf.xlu0
    %v1027 = vpop.trf.xlu0
    %v1028 = vpop.trf.xlu0
    %v1029 = vpop.trf.xlu0
    %v1030 = vpop.trf.xlu0
    %1031 = vxpose.xlu0.b32.start [1/16] %v429, 128
    %1032 = vxpose.xlu0.b32.cont [2/16] 0.0, 128
    %1033 = vxpose.xlu0.b32.cont [3/16] 0.0, 128
    %1034 = vxpose.xlu0.b32.cont [4/16] 0.0, 128
    %1035 = vxpose.xlu0.b32.cont [5/16] 0.0, 128
    %1036 = vxpose.xlu0.b32.cont [6/16] 0.0, 128
    %1037 = vxpose.xlu0.b32.cont [7/16] 0.0, 128
    %1038 = vxpose.xlu0.b32.cont [8/16] 0.0, 128
    %1039 = vxpose.xlu0.b32.cont [9/16] 0.0, 128
    %1040 = vxpose.xlu0.b32.cont [10/16] 0.0, 128
    %1041 = vxpose.xlu0.b32.cont [11/16] 0.0, 128
    %1042 = vxpose.xlu0.b32.cont [12/16] 0.0, 128
    %1043 = vxpose.xlu0.b32.cont [13/16] 0.0, 128
    %1044 = vxpose.xlu0.b32.cont [14/16] 0.0, 128
    %1045 = vxpose.xlu0.b32.cont [15/16] 0.0, 128
    %1046 = vxpose.xlu0.b32.end [16/16] 0.0, 128
    %v1047 = vpop.trf.xlu0
    %v1048 = vpop.trf.xlu0
    %v1049 = vpop.trf.xlu0
    %v1050 = vpop.trf.xlu0
    %v1051 = vpop.trf.xlu0
    %v1052 = vpop.trf.xlu0
    %v1053 = vpop.trf.xlu0
    %v1054 = vpop.trf.xlu0
    %v1055 = vpop.trf.xlu0
    %v1056 = vpop.trf.xlu0
    %v1057 = vpop.trf.xlu0
    %v1058 = vpop.trf.xlu0
    %v1059 = vpop.trf.xlu0
    %v1060 = vpop.trf.xlu0
    %v1061 = vpop.trf.xlu0
    %v1062 = vpop.trf.xlu0
    %1063 = vxpose.xlu0.b32.start [1/16] %v430, 128
    %1064 = vxpose.xlu0.b32.cont [2/16] 0.0, 128
    %1065 = vxpose.xlu0.b32.cont [3/16] 0.0, 128
    %1066 = vxpose.xlu0.b32.cont [4/16] 0.0, 128
    %1067 = vxpose.xlu0.b32.cont [5/16] 0.0, 128
    %1068 = vxpose.xlu0.b32.cont [6/16] 0.0, 128
    %1069 = vxpose.xlu0.b32.cont [7/16] 0.0, 128
    %1070 = vxpose.xlu0.b32.cont [8/16] 0.0, 128
    %1071 = vxpose.xlu0.b32.cont [9/16] 0.0, 128
    %1072 = vxpose.xlu0.b32.cont [10/16] 0.0, 128
    %1073 = vxpose.xlu0.b32.cont [11/16] 0.0, 128
    %1074 = vxpose.xlu0.b32.cont [12/16] 0.0, 128
    %1075 = vxpose.xlu0.b32.cont [13/16] 0.0, 128
    %1076 = vxpose.xlu0.b32.cont [14/16] 0.0, 128
    %1077 = vxpose.xlu0.b32.cont [15/16] 0.0, 128
    %1078 = vxpose.xlu0.b32.end [16/16] 0.0, 128
    %v1079 = vpop.trf.xlu0
    %v1080 = vpop.trf.xlu0
    %v1081 = vpop.trf.xlu0
    %v1082 = vpop.trf.xlu0
    %v1083 = vpop.trf.xlu0
    %v1084 = vpop.trf.xlu0
    %v1085 = vpop.trf.xlu0
    %v1086 = vpop.trf.xlu0
    %v1087 = vpop.trf.xlu0
    %v1088 = vpop.trf.xlu0
    %v1089 = vpop.trf.xlu0
    %v1090 = vpop.trf.xlu0
    %v1091 = vpop.trf.xlu0
    %v1092 = vpop.trf.xlu0
    %v1093 = vpop.trf.xlu0
    %v1094 = vpop.trf.xlu0
    %1095 = vxpose.xlu0.b32.start [1/16] %v559, 128
    %1096 = vxpose.xlu0.b32.cont [2/16] 0.0, 128
    %1097 = vxpose.xlu0.b32.cont [3/16] 0.0, 128
    %1098 = vxpose.xlu0.b32.cont [4/16] 0.0, 128
    %1099 = vxpose.xlu0.b32.cont [5/16] 0.0, 128
    %1100 = vxpose.xlu0.b32.cont [6/16] 0.0, 128
    %1101 = vxpose.xlu0.b32.cont [7/16] 0.0, 128
    %1102 = vxpose.xlu0.b32.cont [8/16] 0.0, 128
    %1103 = vxpose.xlu0.b32.cont [9/16] 0.0, 128
    %1104 = vxpose.xlu0.b32.cont [10/16] 0.0, 128
    %1105 = vxpose.xlu0.b32.cont [11/16] 0.0, 128
    %1106 = vxpose.xlu0.b32.cont [12/16] 0.0, 128
    %1107 = vxpose.xlu0.b32.cont [13/16] 0.0, 128
    %1108 = vxpose.xlu0.b32.cont [14/16] 0.0, 128
    %1109 = vxpose.xlu0.b32.cont [15/16] 0.0, 128
    %1110 = vxpose.xlu0.b32.end [16/16] 0.0, 128
    %v1111 = vpop.trf.xlu0
    %v1112 = vpop.trf.xlu0
    %v1113 = vpop.trf.xlu0
    %v1114 = vpop.trf.xlu0
    %v1115 = vpop.trf.xlu0
    %v1116 = vpop.trf.xlu0
    %v1117 = vpop.trf.xlu0
    %v1118 = vpop.trf.xlu0
    %v1119 = vpop.trf.xlu0
    %v1120 = vpop.trf.xlu0
    %v1121 = vpop.trf.xlu0
    %v1122 = vpop.trf.xlu0
    %v1123 = vpop.trf.xlu0
    %v1124 = vpop.trf.xlu0
    %v1125 = vpop.trf.xlu0
    %v1126 = vpop.trf.xlu0
    %1127 = vxpose.xlu0.b32.start [1/16] %v560, 128
    %1128 = vxpose.xlu0.b32.cont [2/16] 0.0, 128
    %1129 = vxpose.xlu0.b32.cont [3/16] 0.0, 128
    %1130 = vxpose.xlu0.b32.cont [4/16] 0.0, 128
    %1131 = vxpose.xlu0.b32.cont [5/16] 0.0, 128
    %1132 = vxpose.xlu0.b32.cont [6/16] 0.0, 128
    %1133 = vxpose.xlu0.b32.cont [7/16] 0.0, 128
    %1134 = vxpose.xlu0.b32.cont [8/16] 0.0, 128
    %1135 = vxpose.xlu0.b32.cont [9/16] 0.0, 128
    %1136 = vxpose.xlu0.b32.cont [10/16] 0.0, 128
    %1137 = vxpose.xlu0.b32.cont [11/16] 0.0, 128
    %1138 = vxpose.xlu0.b32.cont [12/16] 0.0, 128
    %1139 = vxpose.xlu0.b32.cont [13/16] 0.0, 128
    %1140 = vxpose.xlu0.b32.cont [14/16] 0.0, 128
    %1141 = vxpose.xlu0.b32.cont [15/16] 0.0, 128
    %1142 = vxpose.xlu0.b32.end [16/16] 0.0, 128
    %v1143 = vpop.trf.xlu0
    %v1144 = vpop.trf.xlu0
    %v1145 = vpop.trf.xlu0
    %v1146 = vpop.trf.xlu0
    %v1147 = vpop.trf.xlu0
    %v1148 = vpop.trf.xlu0
    %v1149 = vpop.trf.xlu0
    %v1150 = vpop.trf.xlu0
    %v1151 = vpop.trf.xlu0
    %v1152 = vpop.trf.xlu0
    %v1153 = vpop.trf.xlu0
    %v1154 = vpop.trf.xlu0
    %v1155 = vpop.trf.xlu0
    %v1156 = vpop.trf.xlu0
    %v1157 = vpop.trf.xlu0
    %v1158 = vpop.trf.xlu0
    %1159 = vxpose.xlu0.b32.start [1/16] %v561, 128
    %1160 = vxpose.xlu0.b32.cont [2/16] 0.0, 128
    %1161 = vxpose.xlu0.b32.cont [3/16] 0.0, 128
    %1162 = vxpose.xlu0.b32.cont [4/16] 0.0, 128
    %1163 = vxpose.xlu0.b32.cont [5/16] 0.0, 128
    %1164 = vxpose.xlu0.b32.cont [6/16] 0.0, 128
    %1165 = vxpose.xlu0.b32.cont [7/16] 0.0, 128
    %1166 = vxpose.xlu0.b32.cont [8/16] 0.0, 128
    %1167 = vxpose.xlu0.b32.cont [9/16] 0.0, 128
    %1168 = vxpose.xlu0.b32.cont [10/16] 0.0, 128
    %1169 = vxpose.xlu0.b32.cont [11/16] 0.0, 128
    %1170 = vxpose.xlu0.b32.cont [12/16] 0.0, 128
    %1171 = vxpose.xlu0.b32.cont [13/16] 0.0, 128
    %1172 = vxpose.xlu0.b32.cont [14/16] 0.0, 128
    %1173 = vxpose.xlu0.b32.cont [15/16] 0.0, 128
    %1174 = vxpose.xlu0.b32.end [16/16] 0.0, 128
    %v1175 = vpop.trf.xlu0
    %v1176 = vpop.trf.xlu0
    %v1177 = vpop.trf.xlu0
    %v1178 = vpop.trf.xlu0
    %v1179 = vpop.trf.xlu0
    %v1180 = vpop.trf.xlu0
    %v1181 = vpop.trf.xlu0
    %v1182 = vpop.trf.xlu0
    %v1183 = vpop.trf.xlu0
    %v1184 = vpop.trf.xlu0
    %v1185 = vpop.trf.xlu0
    %v1186 = vpop.trf.xlu0
    %v1187 = vpop.trf.xlu0
    %v1188 = vpop.trf.xlu0
    %v1189 = vpop.trf.xlu0
    %v1190 = vpop.trf.xlu0
    %1191 = vxpose.xlu0.b32.start [1/16] %v562, 128
    %1192 = vxpose.xlu0.b32.cont [2/16] 0.0, 128
    %1193 = vxpose.xlu0.b32.cont [3/16] 0.0, 128
    %1194 = vxpose.xlu0.b32.cont [4/16] 0.0, 128
    %1195 = vxpose.xlu0.b32.cont [5/16] 0.0, 128
    %1196 = vxpose.xlu0.b32.cont [6/16] 0.0, 128
    %1197 = vxpose.xlu0.b32.cont [7/16] 0.0, 128
    %1198 = vxpose.xlu0.b32.cont [8/16] 0.0, 128
    %1199 = vxpose.xlu0.b32.cont [9/16] 0.0, 128
    %1200 = vxpose.xlu0.b32.cont [10/16] 0.0, 128
    %1201 = vxpose.xlu0.b32.cont [11/16] 0.0, 128
    %1202 = vxpose.xlu0.b32.cont [12/16] 0.0, 128
    %1203 = vxpose.xlu0.b32.cont [13/16] 0.0, 128
    %1204 = vxpose.xlu0.b32.cont [14/16] 0.0, 128
    %1205 = vxpose.xlu0.b32.cont [15/16] 0.0, 128
    %1206 = vxpose.xlu0.b32.end [16/16] 0.0, 128
    %v1207 = vpop.trf.xlu0
    %v1208 = vpop.trf.xlu0
    %v1209 = vpop.trf.xlu0
    %v1210 = vpop.trf.xlu0
    %v1211 = vpop.trf.xlu0
    %v1212 = vpop.trf.xlu0
    %v1213 = vpop.trf.xlu0
    %v1214 = vpop.trf.xlu0
    %v1215 = vpop.trf.xlu0
    %v1216 = vpop.trf.xlu0
    %v1217 = vpop.trf.xlu0
    %v1218 = vpop.trf.xlu0
    %v1219 = vpop.trf.xlu0
    %v1220 = vpop.trf.xlu0
    %v1221 = vpop.trf.xlu0
    %v1222 = vpop.trf.xlu0
    %1223 = vxpose.xlu0.b32.start [1/16] %v563, 128
    %1224 = vxpose.xlu0.b32.cont [2/16] 0.0, 128
    %1225 = vxpose.xlu0.b32.cont [3/16] 0.0, 128
    %1226 = vxpose.xlu0.b32.cont [4/16] 0.0, 128
    %1227 = vxpose.xlu0.b32.cont [5/16] 0.0, 128
    %1228 = vxpose.xlu0.b32.cont [6/16] 0.0, 128
    %1229 = vxpose.xlu0.b32.cont [7/16] 0.0, 128
    %1230 = vxpose.xlu0.b32.cont [8/16] 0.0, 128
    %1231 = vxpose.xlu0.b32.cont [9/16] 0.0, 128
    %1232 = vxpose.xlu0.b32.cont [10/16] 0.0, 128
    %1233 = vxpose.xlu0.b32.cont [11/16] 0.0, 128
    %1234 = vxpose.xlu0.b32.cont [12/16] 0.0, 128
    %1235 = vxpose.xlu0.b32.cont [13/16] 0.0, 128
    %1236 = vxpose.xlu0.b32.cont [14/16] 0.0, 128
    %1237 = vxpose.xlu0.b32.cont [15/16] 0.0, 128
    %1238 = vxpose.xlu0.b32.end [16/16] 0.0, 128
    %v1239 = vpop.trf.xlu0
    %v1240 = vpop.trf.xlu0
    %v1241 = vpop.trf.xlu0
    %v1242 = vpop.trf.xlu0
    %v1243 = vpop.trf.xlu0
    %v1244 = vpop.trf.xlu0
    %v1245 = vpop.trf.xlu0
    %v1246 = vpop.trf.xlu0
    %v1247 = vpop.trf.xlu0
    %v1248 = vpop.trf.xlu0
    %v1249 = vpop.trf.xlu0
    %v1250 = vpop.trf.xlu0
    %v1251 = vpop.trf.xlu0
    %v1252 = vpop.trf.xlu0
    %v1253 = vpop.trf.xlu0
    %v1254 = vpop.trf.xlu0
    %1255 = vxpose.xlu0.b32.start [1/16] %v564, 128
    %1256 = vxpose.xlu0.b32.cont [2/16] 0.0, 128
    %1257 = vxpose.xlu0.b32.cont [3/16] 0.0, 128
    %1258 = vxpose.xlu0.b32.cont [4/16] 0.0, 128
    %1259 = vxpose.xlu0.b32.cont [5/16] 0.0, 128
    %1260 = vxpose.xlu0.b32.cont [6/16] 0.0, 128
    %1261 = vxpose.xlu0.b32.cont [7/16] 0.0, 128
    %1262 = vxpose.xlu0.b32.cont [8/16] 0.0, 128
    %1263 = vxpose.xlu0.b32.cont [9/16] 0.0, 128
    %1264 = vxpose.xlu0.b32.cont [10/16] 0.0, 128
    %1265 = vxpose.xlu0.b32.cont [11/16] 0.0, 128
    %1266 = vxpose.xlu0.b32.cont [12/16] 0.0, 128
    %1267 = vxpose.xlu0.b32.cont [13/16] 0.0, 128
    %1268 = vxpose.xlu0.b32.cont [14/16] 0.0, 128
    %1269 = vxpose.xlu0.b32.cont [15/16] 0.0, 128
    %1270 = vxpose.xlu0.b32.end [16/16] 0.0, 128
    %v1271 = vpop.trf.xlu0
    %v1272 = vpop.trf.xlu0
    %v1273 = vpop.trf.xlu0
    %v1274 = vpop.trf.xlu0
    %v1275 = vpop.trf.xlu0
    %v1276 = vpop.trf.xlu0
    %v1277 = vpop.trf.xlu0
    %v1278 = vpop.trf.xlu0
    %v1279 = vpop.trf.xlu0
    %v1280 = vpop.trf.xlu0
    %v1281 = vpop.trf.xlu0
    %v1282 = vpop.trf.xlu0
    %v1283 = vpop.trf.xlu0
    %v1284 = vpop.trf.xlu0
    %v1285 = vpop.trf.xlu0
    %v1286 = vpop.trf.xlu0
    %1287 = vxpose.xlu0.b32.start [1/16] %v565, 128
    %1288 = vxpose.xlu0.b32.cont [2/16] 0.0, 128
    %1289 = vxpose.xlu0.b32.cont [3/16] 0.0, 128
    %1290 = vxpose.xlu0.b32.cont [4/16] 0.0, 128
    %1291 = vxpose.xlu0.b32.cont [5/16] 0.0, 128
    %1292 = vxpose.xlu0.b32.cont [6/16] 0.0, 128
    %1293 = vxpose.xlu0.b32.cont [7/16] 0.0, 128
    %1294 = vxpose.xlu0.b32.cont [8/16] 0.0, 128
    %1295 = vxpose.xlu0.b32.cont [9/16] 0.0, 128
    %1296 = vxpose.xlu0.b32.cont [10/16] 0.0, 128
    %1297 = vxpose.xlu0.b32.cont [11/16] 0.0, 128
    %1298 = vxpose.xlu0.b32.cont [12/16] 0.0, 128
    %1299 = vxpose.xlu0.b32.cont [13/16] 0.0, 128
    %1300 = vxpose.xlu0.b32.cont [14/16] 0.0, 128
    %1301 = vxpose.xlu0.b32.cont [15/16] 0.0, 128
    %1302 = vxpose.xlu0.b32.end [16/16] 0.0, 128
    %v1303 = vpop.trf.xlu0
    %v1304 = vpop.trf.xlu0
    %v1305 = vpop.trf.xlu0
    %v1306 = vpop.trf.xlu0
    %v1307 = vpop.trf.xlu0
    %v1308 = vpop.trf.xlu0
    %v1309 = vpop.trf.xlu0
    %v1310 = vpop.trf.xlu0
    %v1311 = vpop.trf.xlu0
    %v1312 = vpop.trf.xlu0
    %v1313 = vpop.trf.xlu0
    %v1314 = vpop.trf.xlu0
    %v1315 = vpop.trf.xlu0
    %v1316 = vpop.trf.xlu0
    %v1317 = vpop.trf.xlu0
    %v1318 = vpop.trf.xlu0
    %1319 = vxpose.xlu0.b32.start [1/16] %v566, 128
    %1320 = vxpose.xlu0.b32.cont [2/16] 0.0, 128
    %1321 = vxpose.xlu0.b32.cont [3/16] 0.0, 128
    %1322 = vxpose.xlu0.b32.cont [4/16] 0.0, 128
    %1323 = vxpose.xlu0.b32.cont [5/16] 0.0, 128
    %1324 = vxpose.xlu0.b32.cont [6/16] 0.0, 128
    %1325 = vxpose.xlu0.b32.cont [7/16] 0.0, 128
    %1326 = vxpose.xlu0.b32.cont [8/16] 0.0, 128
    %1327 = vxpose.xlu0.b32.cont [9/16] 0.0, 128
    %1328 = vxpose.xlu0.b32.cont [10/16] 0.0, 128
    %1329 = vxpose.xlu0.b32.cont [11/16] 0.0, 128
    %1330 = vxpose.xlu0.b32.cont [12/16] 0.0, 128
    %1331 = vxpose.xlu0.b32.cont [13/16] 0.0, 128
    %1332 = vxpose.xlu0.b32.cont [14/16] 0.0, 128
    %1333 = vxpose.xlu0.b32.cont [15/16] 0.0, 128
    %1334 = vxpose.xlu0.b32.end [16/16] 0.0, 128
    %v1335 = vpop.trf.xlu0
    %v1336 = vpop.trf.xlu0
    %v1337 = vpop.trf.xlu0
    %v1338 = vpop.trf.xlu0
    %v1339 = vpop.trf.xlu0
    %v1340 = vpop.trf.xlu0
    %v1341 = vpop.trf.xlu0
    %v1342 = vpop.trf.xlu0
    %v1343 = vpop.trf.xlu0
    %v1344 = vpop.trf.xlu0
    %v1345 = vpop.trf.xlu0
    %v1346 = vpop.trf.xlu0
    %v1347 = vpop.trf.xlu0
    %v1348 = vpop.trf.xlu0
    %v1349 = vpop.trf.xlu0
    %v1350 = vpop.trf.xlu0
    %1351 = vxpose.xlu0.b32.start [1/16] %v695, 128
    %1352 = vxpose.xlu0.b32.cont [2/16] 0.0, 128
    %1353 = vxpose.xlu0.b32.cont [3/16] 0.0, 128
    %1354 = vxpose.xlu0.b32.cont [4/16] 0.0, 128
    %1355 = vxpose.xlu0.b32.cont [5/16] 0.0, 128
    %1356 = vxpose.xlu0.b32.cont [6/16] 0.0, 128
    %1357 = vxpose.xlu0.b32.cont [7/16] 0.0, 128
    %1358 = vxpose.xlu0.b32.cont [8/16] 0.0, 128
    %1359 = vxpose.xlu0.b32.cont [9/16] 0.0, 128
    %1360 = vxpose.xlu0.b32.cont [10/16] 0.0, 128
    %1361 = vxpose.xlu0.b32.cont [11/16] 0.0, 128
    %1362 = vxpose.xlu0.b32.cont [12/16] 0.0, 128
    %1363 = vxpose.xlu0.b32.cont [13/16] 0.0, 128
    %1364 = vxpose.xlu0.b32.cont [14/16] 0.0, 128
    %1365 = vxpose.xlu0.b32.cont [15/16] 0.0, 128
    %1366 = vxpose.xlu0.b32.end [16/16] 0.0, 128
    %v1367 = vpop.trf.xlu0
    %v1368 = vpop.trf.xlu0
    %v1369 = vpop.trf.xlu0
    %v1370 = vpop.trf.xlu0
    %v1371 = vpop.trf.xlu0
    %v1372 = vpop.trf.xlu0
    %v1373 = vpop.trf.xlu0
    %v1374 = vpop.trf.xlu0
    %v1375 = vpop.trf.xlu0
    %v1376 = vpop.trf.xlu0
    %v1377 = vpop.trf.xlu0
    %v1378 = vpop.trf.xlu0
    %v1379 = vpop.trf.xlu0
    %v1380 = vpop.trf.xlu0
    %v1381 = vpop.trf.xlu0
    %v1382 = vpop.trf.xlu0
    %1383 = vxpose.xlu0.b32.start [1/16] %v696, 128
    %1384 = vxpose.xlu0.b32.cont [2/16] 0.0, 128
    %1385 = vxpose.xlu0.b32.cont [3/16] 0.0, 128
    %1386 = vxpose.xlu0.b32.cont [4/16] 0.0, 128
    %1387 = vxpose.xlu0.b32.cont [5/16] 0.0, 128
    %1388 = vxpose.xlu0.b32.cont [6/16] 0.0, 128
    %1389 = vxpose.xlu0.b32.cont [7/16] 0.0, 128
    %1390 = vxpose.xlu0.b32.cont [8/16] 0.0, 128
    %1391 = vxpose.xlu0.b32.cont [9/16] 0.0, 128
    %1392 = vxpose.xlu0.b32.cont [10/16] 0.0, 128
    %1393 = vxpose.xlu0.b32.cont [11/16] 0.0, 128
    %1394 = vxpose.xlu0.b32.cont [12/16] 0.0, 128
    %1395 = vxpose.xlu0.b32.cont [13/16] 0.0, 128
    %1396 = vxpose.xlu0.b32.cont [14/16] 0.0, 128
    %1397 = vxpose.xlu0.b32.cont [15/16] 0.0, 128
    %1398 = vxpose.xlu0.b32.end [16/16] 0.0, 128
    %v1399 = vpop.trf.xlu0
    %v1400 = vpop.trf.xlu0
    %v1401 = vpop.trf.xlu0
    %v1402 = vpop.trf.xlu0
    %v1403 = vpop.trf.xlu0
    %v1404 = vpop.trf.xlu0
    %v1405 = vpop.trf.xlu0
    %v1406 = vpop.trf.xlu0
    %v1407 = vpop.trf.xlu0
    %v1408 = vpop.trf.xlu0
    %v1409 = vpop.trf.xlu0
    %v1410 = vpop.trf.xlu0
    %v1411 = vpop.trf.xlu0
    %v1412 = vpop.trf.xlu0
    %v1413 = vpop.trf.xlu0
    %v1414 = vpop.trf.xlu0
    %1415 = vxpose.xlu0.b32.start [1/16] %v697, 128
    %1416 = vxpose.xlu0.b32.cont [2/16] 0.0, 128
    %1417 = vxpose.xlu0.b32.cont [3/16] 0.0, 128
    %1418 = vxpose.xlu0.b32.cont [4/16] 0.0, 128
    %1419 = vxpose.xlu0.b32.cont [5/16] 0.0, 128
    %1420 = vxpose.xlu0.b32.cont [6/16] 0.0, 128
    %1421 = vxpose.xlu0.b32.cont [7/16] 0.0, 128
    %1422 = vxpose.xlu0.b32.cont [8/16] 0.0, 128
    %1423 = vxpose.xlu0.b32.cont [9/16] 0.0, 128
    %1424 = vxpose.xlu0.b32.cont [10/16] 0.0, 128
    %1425 = vxpose.xlu0.b32.cont [11/16] 0.0, 128
    %1426 = vxpose.xlu0.b32.cont [12/16] 0.0, 128
    %1427 = vxpose.xlu0.b32.cont [13/16] 0.0, 128
    %1428 = vxpose.xlu0.b32.cont [14/16] 0.0, 128
    %1429 = vxpose.xlu0.b32.cont [15/16] 0.0, 128
    %1430 = vxpose.xlu0.b32.end [16/16] 0.0, 128
    %v1431 = vpop.trf.xlu0
    %v1432 = vpop.trf.xlu0
    %v1433 = vpop.trf.xlu0
    %v1434 = vpop.trf.xlu0
    %v1435 = vpop.trf.xlu0
    %v1436 = vpop.trf.xlu0
    %v1437 = vpop.trf.xlu0
    %v1438 = vpop.trf.xlu0
    %v1439 = vpop.trf.xlu0
    %v1440 = vpop.trf.xlu0
    %v1441 = vpop.trf.xlu0
    %v1442 = vpop.trf.xlu0
    %v1443 = vpop.trf.xlu0
    %v1444 = vpop.trf.xlu0
    %v1445 = vpop.trf.xlu0
    %v1446 = vpop.trf.xlu0
    %1447 = vxpose.xlu0.b32.start [1/16] %v698, 128
    %1448 = vxpose.xlu0.b32.cont [2/16] 0.0, 128
    %1449 = vxpose.xlu0.b32.cont [3/16] 0.0, 128
    %1450 = vxpose.xlu0.b32.cont [4/16] 0.0, 128
    %1451 = vxpose.xlu0.b32.cont [5/16] 0.0, 128
    %1452 = vxpose.xlu0.b32.cont [6/16] 0.0, 128
    %1453 = vxpose.xlu0.b32.cont [7/16] 0.0, 128
    %1454 = vxpose.xlu0.b32.cont [8/16] 0.0, 128
    %1455 = vxpose.xlu0.b32.cont [9/16] 0.0, 128
    %1456 = vxpose.xlu0.b32.cont [10/16] 0.0, 128
    %1457 = vxpose.xlu0.b32.cont [11/16] 0.0, 128
    %1458 = vxpose.xlu0.b32.cont [12/16] 0.0, 128
    %1459 = vxpose.xlu0.b32.cont [13/16] 0.0, 128
    %1460 = vxpose.xlu0.b32.cont [14/16] 0.0, 128
    %1461 = vxpose.xlu0.b32.cont [15/16] 0.0, 128
    %1462 = vxpose.xlu0.b32.end [16/16] 0.0, 128
    %v1463 = vpop.trf.xlu0
    %v1464 = vpop.trf.xlu0
    %v1465 = vpop.trf.xlu0
    %v1466 = vpop.trf.xlu0
    %v1467 = vpop.trf.xlu0
    %v1468 = vpop.trf.xlu0
    %v1469 = vpop.trf.xlu0
    %v1470 = vpop.trf.xlu0
    %v1471 = vpop.trf.xlu0
    %v1472 = vpop.trf.xlu0
    %v1473 = vpop.trf.xlu0
    %v1474 = vpop.trf.xlu0
    %v1475 = vpop.trf.xlu0
    %v1476 = vpop.trf.xlu0
    %v1477 = vpop.trf.xlu0
    %v1478 = vpop.trf.xlu0
    %1479 = vxpose.xlu0.b32.start [1/16] %v699, 128
    %1480 = vxpose.xlu0.b32.cont [2/16] 0.0, 128
    %1481 = vxpose.xlu0.b32.cont [3/16] 0.0, 128
    %1482 = vxpose.xlu0.b32.cont [4/16] 0.0, 128
    %1483 = vxpose.xlu0.b32.cont [5/16] 0.0, 128
    %1484 = vxpose.xlu0.b32.cont [6/16] 0.0, 128
    %1485 = vxpose.xlu0.b32.cont [7/16] 0.0, 128
    %1486 = vxpose.xlu0.b32.cont [8/16] 0.0, 128
    %1487 = vxpose.xlu0.b32.cont [9/16] 0.0, 128
    %1488 = vxpose.xlu0.b32.cont [10/16] 0.0, 128
    %1489 = vxpose.xlu0.b32.cont [11/16] 0.0, 128
    %1490 = vxpose.xlu0.b32.cont [12/16] 0.0, 128
    %1491 = vxpose.xlu0.b32.cont [13/16] 0.0, 128
    %1492 = vxpose.xlu0.b32.cont [14/16] 0.0, 128
    %1493 = vxpose.xlu0.b32.cont [15/16] 0.0, 128
    %1494 = vxpose.xlu0.b32.end [16/16] 0.0, 128
    %v1495 = vpop.trf.xlu0
    %v1496 = vpop.trf.xlu0
    %v1497 = vpop.trf.xlu0
    %v1498 = vpop.trf.xlu0
    %v1499 = vpop.trf.xlu0
    %v1500 = vpop.trf.xlu0
    %v1501 = vpop.trf.xlu0
    %v1502 = vpop.trf.xlu0
    %v1503 = vpop.trf.xlu0
    %v1504 = vpop.trf.xlu0
    %v1505 = vpop.trf.xlu0
    %v1506 = vpop.trf.xlu0
    %v1507 = vpop.trf.xlu0
    %v1508 = vpop.trf.xlu0
    %v1509 = vpop.trf.xlu0
    %v1510 = vpop.trf.xlu0
    %1511 = vxpose.xlu0.b32.start [1/16] %v700, 128
    %1512 = vxpose.xlu0.b32.cont [2/16] 0.0, 128
    %1513 = vxpose.xlu0.b32.cont [3/16] 0.0, 128
    %1514 = vxpose.xlu0.b32.cont [4/16] 0.0, 128
    %1515 = vxpose.xlu0.b32.cont [5/16] 0.0, 128
    %1516 = vxpose.xlu0.b32.cont [6/16] 0.0, 128
    %1517 = vxpose.xlu0.b32.cont [7/16] 0.0, 128
    %1518 = vxpose.xlu0.b32.cont [8/16] 0.0, 128
    %1519 = vxpose.xlu0.b32.cont [9/16] 0.0, 128
    %1520 = vxpose.xlu0.b32.cont [10/16] 0.0, 128
    %1521 = vxpose.xlu0.b32.cont [11/16] 0.0, 128
    %1522 = vxpose.xlu0.b32.cont [12/16] 0.0, 128
    %1523 = vxpose.xlu0.b32.cont [13/16] 0.0, 128
    %1524 = vxpose.xlu0.b32.cont [14/16] 0.0, 128
    %1525 = vxpose.xlu0.b32.cont [15/16] 0.0, 128
    %1526 = vxpose.xlu0.b32.end [16/16] 0.0, 128
    %v1527 = vpop.trf.xlu0
    %v1528 = vpop.trf.xlu0
    %v1529 = vpop.trf.xlu0
    %v1530 = vpop.trf.xlu0
    %v1531 = vpop.trf.xlu0
    %v1532 = vpop.trf.xlu0
    %v1533 = vpop.trf.xlu0
    %v1534 = vpop.trf.xlu0
    %v1535 = vpop.trf.xlu0
    %v1536 = vpop.trf.xlu0
    %v1537 = vpop.trf.xlu0
    %v1538 = vpop.trf.xlu0
    %v1539 = vpop.trf.xlu0
    %v1540 = vpop.trf.xlu0
    %v1541 = vpop.trf.xlu0
    %v1542 = vpop.trf.xlu0
    %1543 = vxpose.xlu0.b32.start [1/16] %v701, 128
    %1544 = vxpose.xlu0.b32.cont [2/16] 0.0, 128
    %1545 = vxpose.xlu0.b32.cont [3/16] 0.0, 128
    %1546 = vxpose.xlu0.b32.cont [4/16] 0.0, 128
    %1547 = vxpose.xlu0.b32.cont [5/16] 0.0, 128
    %1548 = vxpose.xlu0.b32.cont [6/16] 0.0, 128
    %1549 = vxpose.xlu0.b32.cont [7/16] 0.0, 128
    %1550 = vxpose.xlu0.b32.cont [8/16] 0.0, 128
    %1551 = vxpose.xlu0.b32.cont [9/16] 0.0, 128
    %1552 = vxpose.xlu0.b32.cont [10/16] 0.0, 128
    %1553 = vxpose.xlu0.b32.cont [11/16] 0.0, 128
    %1554 = vxpose.xlu0.b32.cont [12/16] 0.0, 128
    %1555 = vxpose.xlu0.b32.cont [13/16] 0.0, 128
    %1556 = vxpose.xlu0.b32.cont [14/16] 0.0, 128
    %1557 = vxpose.xlu0.b32.cont [15/16] 0.0, 128
    %1558 = vxpose.xlu0.b32.end [16/16] 0.0, 128
    %v1559 = vpop.trf.xlu0
    %v1560 = vpop.trf.xlu0
    %v1561 = vpop.trf.xlu0
    %v1562 = vpop.trf.xlu0
    %v1563 = vpop.trf.xlu0
    %v1564 = vpop.trf.xlu0
    %v1565 = vpop.trf.xlu0
    %v1566 = vpop.trf.xlu0
    %v1567 = vpop.trf.xlu0
    %v1568 = vpop.trf.xlu0
    %v1569 = vpop.trf.xlu0
    %v1570 = vpop.trf.xlu0
    %v1571 = vpop.trf.xlu0
    %v1572 = vpop.trf.xlu0
    %v1573 = vpop.trf.xlu0
    %v1574 = vpop.trf.xlu0
    %1575 = vxpose.xlu0.b32.start [1/16] %v702, 128
    %1576 = vxpose.xlu0.b32.cont [2/16] 0.0, 128
    %1577 = vxpose.xlu0.b32.cont [3/16] 0.0, 128
    %1578 = vxpose.xlu0.b32.cont [4/16] 0.0, 128
    %1579 = vxpose.xlu0.b32.cont [5/16] 0.0, 128
    %1580 = vxpose.xlu0.b32.cont [6/16] 0.0, 128
    %1581 = vxpose.xlu0.b32.cont [7/16] 0.0, 128
    %1582 = vxpose.xlu0.b32.cont [8/16] 0.0, 128
    %1583 = vxpose.xlu0.b32.cont [9/16] 0.0, 128
    %1584 = vxpose.xlu0.b32.cont [10/16] 0.0, 128
    %1585 = vxpose.xlu0.b32.cont [11/16] 0.0, 128
    %1586 = vxpose.xlu0.b32.cont [12/16] 0.0, 128
    %1587 = vxpose.xlu0.b32.cont [13/16] 0.0, 128
    %1588 = vxpose.xlu0.b32.cont [14/16] 0.0, 128
    %1589 = vxpose.xlu0.b32.cont [15/16] 0.0, 128
    %1590 = vxpose.xlu0.b32.end [16/16] 0.0, 128
    %v1591 = vpop.trf.xlu0
    %v1592 = vpop.trf.xlu0
    %v1593 = vpop.trf.xlu0
    %v1594 = vpop.trf.xlu0
    %v1595 = vpop.trf.xlu0
    %v1596 = vpop.trf.xlu0
    %v1597 = vpop.trf.xlu0
    %v1598 = vpop.trf.xlu0
    %v1599 = vpop.trf.xlu0
    %v1600 = vpop.trf.xlu0
    %v1601 = vpop.trf.xlu0
    %v1602 = vpop.trf.xlu0
    %v1603 = vpop.trf.xlu0
    %v1604 = vpop.trf.xlu0
    %v1605 = vpop.trf.xlu0
    %v1606 = vpop.trf.xlu0
    %1607 = vxpose.xlu0.b32.start [1/16] %v831, 128
    %1608 = vxpose.xlu0.b32.cont [2/16] 0.0, 128
    %1609 = vxpose.xlu0.b32.cont [3/16] 0.0, 128
    %1610 = vxpose.xlu0.b32.cont [4/16] 0.0, 128
    %1611 = vxpose.xlu0.b32.cont [5/16] 0.0, 128
    %1612 = vxpose.xlu0.b32.cont [6/16] 0.0, 128
    %1613 = vxpose.xlu0.b32.cont [7/16] 0.0, 128
    %1614 = vxpose.xlu0.b32.cont [8/16] 0.0, 128
    %1615 = vxpose.xlu0.b32.cont [9/16] 0.0, 128
    %1616 = vxpose.xlu0.b32.cont [10/16] 0.0, 128
    %1617 = vxpose.xlu0.b32.cont [11/16] 0.0, 128
    %1618 = vxpose.xlu0.b32.cont [12/16] 0.0, 128
    %1619 = vxpose.xlu0.b32.cont [13/16] 0.0, 128
    %1620 = vxpose.xlu0.b32.cont [14/16] 0.0, 128
    %1621 = vxpose.xlu0.b32.cont [15/16] 0.0, 128
    %1622 = vxpose.xlu0.b32.end [16/16] 0.0, 128
    %v1623 = vpop.trf.xlu0
    %v1624 = vpop.trf.xlu0
    %v1625 = vpop.trf.xlu0
    %v1626 = vpop.trf.xlu0
    %v1627 = vpop.trf.xlu0
    %v1628 = vpop.trf.xlu0
    %v1629 = vpop.trf.xlu0
    %v1630 = vpop.trf.xlu0
    %v1631 = vpop.trf.xlu0
    %v1632 = vpop.trf.xlu0
    %v1633 = vpop.trf.xlu0
    %v1634 = vpop.trf.xlu0
    %v1635 = vpop.trf.xlu0
    %v1636 = vpop.trf.xlu0
    %v1637 = vpop.trf.xlu0
    %v1638 = vpop.trf.xlu0
    %1639 = vxpose.xlu0.b32.start [1/16] %v832, 128
    %1640 = vxpose.xlu0.b32.cont [2/16] 0.0, 128
    %1641 = vxpose.xlu0.b32.cont [3/16] 0.0, 128
    %1642 = vxpose.xlu0.b32.cont [4/16] 0.0, 128
    %1643 = vxpose.xlu0.b32.cont [5/16] 0.0, 128
    %1644 = vxpose.xlu0.b32.cont [6/16] 0.0, 128
    %1645 = vxpose.xlu0.b32.cont [7/16] 0.0, 128
    %1646 = vxpose.xlu0.b32.cont [8/16] 0.0, 128
    %1647 = vxpose.xlu0.b32.cont [9/16] 0.0, 128
    %1648 = vxpose.xlu0.b32.cont [10/16] 0.0, 128
    %1649 = vxpose.xlu0.b32.cont [11/16] 0.0, 128
    %1650 = vxpose.xlu0.b32.cont [12/16] 0.0, 128
    %1651 = vxpose.xlu0.b32.cont [13/16] 0.0, 128
    %1652 = vxpose.xlu0.b32.cont [14/16] 0.0, 128
    %1653 = vxpose.xlu0.b32.cont [15/16] 0.0, 128
    %1654 = vxpose.xlu0.b32.end [16/16] 0.0, 128
    %v1655 = vpop.trf.xlu0
    %v1656 = vpop.trf.xlu0
    %v1657 = vpop.trf.xlu0
    %v1658 = vpop.trf.xlu0
    %v1659 = vpop.trf.xlu0
    %v1660 = vpop.trf.xlu0
    %v1661 = vpop.trf.xlu0
    %v1662 = vpop.trf.xlu0
    %v1663 = vpop.trf.xlu0
    %v1664 = vpop.trf.xlu0
    %v1665 = vpop.trf.xlu0
    %v1666 = vpop.trf.xlu0
    %v1667 = vpop.trf.xlu0
    %v1668 = vpop.trf.xlu0
    %v1669 = vpop.trf.xlu0
    %v1670 = vpop.trf.xlu0
    %1671 = vxpose.xlu0.b32.start [1/16] %v833, 128
    %1672 = vxpose.xlu0.b32.cont [2/16] 0.0, 128
    %1673 = vxpose.xlu0.b32.cont [3/16] 0.0, 128
    %1674 = vxpose.xlu0.b32.cont [4/16] 0.0, 128
    %1675 = vxpose.xlu0.b32.cont [5/16] 0.0, 128
    %1676 = vxpose.xlu0.b32.cont [6/16] 0.0, 128
    %1677 = vxpose.xlu0.b32.cont [7/16] 0.0, 128
    %1678 = vxpose.xlu0.b32.cont [8/16] 0.0, 128
    %1679 = vxpose.xlu0.b32.cont [9/16] 0.0, 128
    %1680 = vxpose.xlu0.b32.cont [10/16] 0.0, 128
    %1681 = vxpose.xlu0.b32.cont [11/16] 0.0, 128
    %1682 = vxpose.xlu0.b32.cont [12/16] 0.0, 128
    %1683 = vxpose.xlu0.b32.cont [13/16] 0.0, 128
    %1684 = vxpose.xlu0.b32.cont [14/16] 0.0, 128
    %1685 = vxpose.xlu0.b32.cont [15/16] 0.0, 128
    %1686 = vxpose.xlu0.b32.end [16/16] 0.0, 128
    %v1687 = vpop.trf.xlu0
    %v1688 = vpop.trf.xlu0
    %v1689 = vpop.trf.xlu0
    %v1690 = vpop.trf.xlu0
    %v1691 = vpop.trf.xlu0
    %v1692 = vpop.trf.xlu0
    %v1693 = vpop.trf.xlu0
    %v1694 = vpop.trf.xlu0
    %v1695 = vpop.trf.xlu0
    %v1696 = vpop.trf.xlu0
    %v1697 = vpop.trf.xlu0
    %v1698 = vpop.trf.xlu0
    %v1699 = vpop.trf.xlu0
    %v1700 = vpop.trf.xlu0
    %v1701 = vpop.trf.xlu0
    %v1702 = vpop.trf.xlu0
    %1703 = vxpose.xlu0.b32.start [1/16] %v834, 128
    %1704 = vxpose.xlu0.b32.cont [2/16] 0.0, 128
    %1705 = vxpose.xlu0.b32.cont [3/16] 0.0, 128
    %1706 = vxpose.xlu0.b32.cont [4/16] 0.0, 128
    %1707 = vxpose.xlu0.b32.cont [5/16] 0.0, 128
    %1708 = vxpose.xlu0.b32.cont [6/16] 0.0, 128
    %1709 = vxpose.xlu0.b32.cont [7/16] 0.0, 128
    %1710 = vxpose.xlu0.b32.cont [8/16] 0.0, 128
    %1711 = vxpose.xlu0.b32.cont [9/16] 0.0, 128
    %1712 = vxpose.xlu0.b32.cont [10/16] 0.0, 128
    %1713 = vxpose.xlu0.b32.cont [11/16] 0.0, 128
    %1714 = vxpose.xlu0.b32.cont [12/16] 0.0, 128
    %1715 = vxpose.xlu0.b32.cont [13/16] 0.0, 128
    %1716 = vxpose.xlu0.b32.cont [14/16] 0.0, 128
    %1717 = vxpose.xlu0.b32.cont [15/16] 0.0, 128
    %1718 = vxpose.xlu0.b32.end [16/16] 0.0, 128
    %v1719 = vpop.trf.xlu0
    %v1720 = vpop.trf.xlu0
    %v1721 = vpop.trf.xlu0
    %v1722 = vpop.trf.xlu0
    %v1723 = vpop.trf.xlu0
    %v1724 = vpop.trf.xlu0
    %v1725 = vpop.trf.xlu0
    %v1726 = vpop.trf.xlu0
    %v1727 = vpop.trf.xlu0
    %v1728 = vpop.trf.xlu0
    %v1729 = vpop.trf.xlu0
    %v1730 = vpop.trf.xlu0
    %v1731 = vpop.trf.xlu0
    %v1732 = vpop.trf.xlu0
    %v1733 = vpop.trf.xlu0
    %v1734 = vpop.trf.xlu0
    %1735 = vxpose.xlu0.b32.start [1/16] %v835, 128
    %1736 = vxpose.xlu0.b32.cont [2/16] 0.0, 128
    %1737 = vxpose.xlu0.b32.cont [3/16] 0.0, 128
    %1738 = vxpose.xlu0.b32.cont [4/16] 0.0, 128
    %1739 = vxpose.xlu0.b32.cont [5/16] 0.0, 128
    %1740 = vxpose.xlu0.b32.cont [6/16] 0.0, 128
    %1741 = vxpose.xlu0.b32.cont [7/16] 0.0, 128
    %1742 = vxpose.xlu0.b32.cont [8/16] 0.0, 128
    %1743 = vxpose.xlu0.b32.cont [9/16] 0.0, 128
    %1744 = vxpose.xlu0.b32.cont [10/16] 0.0, 128
    %1745 = vxpose.xlu0.b32.cont [11/16] 0.0, 128
    %1746 = vxpose.xlu0.b32.cont [12/16] 0.0, 128
    %1747 = vxpose.xlu0.b32.cont [13/16] 0.0, 128
    %1748 = vxpose.xlu0.b32.cont [14/16] 0.0, 128
    %1749 = vxpose.xlu0.b32.cont [15/16] 0.0, 128
    %1750 = vxpose.xlu0.b32.end [16/16] 0.0, 128
    %v1751 = vpop.trf.xlu0
    %v1752 = vpop.trf.xlu0
    %v1753 = vpop.trf.xlu0
    %v1754 = vpop.trf.xlu0
    %v1755 = vpop.trf.xlu0
    %v1756 = vpop.trf.xlu0
    %v1757 = vpop.trf.xlu0
    %v1758 = vpop.trf.xlu0
    %v1759 = vpop.trf.xlu0
    %v1760 = vpop.trf.xlu0
    %v1761 = vpop.trf.xlu0
    %v1762 = vpop.trf.xlu0
    %v1763 = vpop.trf.xlu0
    %v1764 = vpop.trf.xlu0
    %v1765 = vpop.trf.xlu0
    %v1766 = vpop.trf.xlu0
    %1767 = vxpose.xlu0.b32.start [1/16] %v836, 128
    %1768 = vxpose.xlu0.b32.cont [2/16] 0.0, 128
    %1769 = vxpose.xlu0.b32.cont [3/16] 0.0, 128
    %1770 = vxpose.xlu0.b32.cont [4/16] 0.0, 128
    %1771 = vxpose.xlu0.b32.cont [5/16] 0.0, 128
    %1772 = vxpose.xlu0.b32.cont [6/16] 0.0, 128
    %1773 = vxpose.xlu0.b32.cont [7/16] 0.0, 128
    %1774 = vxpose.xlu0.b32.cont [8/16] 0.0, 128
    %1775 = vxpose.xlu0.b32.cont [9/16] 0.0, 128
    %1776 = vxpose.xlu0.b32.cont [10/16] 0.0, 128
    %1777 = vxpose.xlu0.b32.cont [11/16] 0.0, 128
    %1778 = vxpose.xlu0.b32.cont [12/16] 0.0, 128
    %1779 = vxpose.xlu0.b32.cont [13/16] 0.0, 128
    %1780 = vxpose.xlu0.b32.cont [14/16] 0.0, 128
    %1781 = vxpose.xlu0.b32.cont [15/16] 0.0, 128
    %1782 = vxpose.xlu0.b32.end [16/16] 0.0, 128
    %v1783 = vpop.trf.xlu0
    %v1784 = vpop.trf.xlu0
    %v1785 = vpop.trf.xlu0
    %v1786 = vpop.trf.xlu0
    %v1787 = vpop.trf.xlu0
    %v1788 = vpop.trf.xlu0
    %v1789 = vpop.trf.xlu0
    %v1790 = vpop.trf.xlu0
    %v1791 = vpop.trf.xlu0
    %v1792 = vpop.trf.xlu0
    %v1793 = vpop.trf.xlu0
    %v1794 = vpop.trf.xlu0
    %v1795 = vpop.trf.xlu0
    %v1796 = vpop.trf.xlu0
    %v1797 = vpop.trf.xlu0
    %v1798 = vpop.trf.xlu0
    %1799 = vxpose.xlu0.b32.start [1/16] %v837, 128
    %1800 = vxpose.xlu0.b32.cont [2/16] 0.0, 128
    %1801 = vxpose.xlu0.b32.cont [3/16] 0.0, 128
    %1802 = vxpose.xlu0.b32.cont [4/16] 0.0, 128
    %1803 = vxpose.xlu0.b32.cont [5/16] 0.0, 128
    %1804 = vxpose.xlu0.b32.cont [6/16] 0.0, 128
    %1805 = vxpose.xlu0.b32.cont [7/16] 0.0, 128
    %1806 = vxpose.xlu0.b32.cont [8/16] 0.0, 128
    %1807 = vxpose.xlu0.b32.cont [9/16] 0.0, 128
    %1808 = vxpose.xlu0.b32.cont [10/16] 0.0, 128
    %1809 = vxpose.xlu0.b32.cont [11/16] 0.0, 128
    %1810 = vxpose.xlu0.b32.cont [12/16] 0.0, 128
    %1811 = vxpose.xlu0.b32.cont [13/16] 0.0, 128
    %1812 = vxpose.xlu0.b32.cont [14/16] 0.0, 128
    %1813 = vxpose.xlu0.b32.cont [15/16] 0.0, 128
    %1814 = vxpose.xlu0.b32.end [16/16] 0.0, 128
    %v1815 = vpop.trf.xlu0
    %v1816 = vpop.trf.xlu0
    %v1817 = vpop.trf.xlu0
    %v1818 = vpop.trf.xlu0
    %v1819 = vpop.trf.xlu0
    %v1820 = vpop.trf.xlu0
    %v1821 = vpop.trf.xlu0
    %v1822 = vpop.trf.xlu0
    %v1823 = vpop.trf.xlu0
    %v1824 = vpop.trf.xlu0
    %v1825 = vpop.trf.xlu0
    %v1826 = vpop.trf.xlu0
    %v1827 = vpop.trf.xlu0
    %v1828 = vpop.trf.xlu0
    %v1829 = vpop.trf.xlu0
    %v1830 = vpop.trf.xlu0
    %1831 = vxpose.xlu0.b32.start [1/16] %v838, 128
    %1832 = vxpose.xlu0.b32.cont [2/16] 0.0, 128
    %1833 = vxpose.xlu0.b32.cont [3/16] 0.0, 128
    %1834 = vxpose.xlu0.b32.cont [4/16] 0.0, 128
    %1835 = vxpose.xlu0.b32.cont [5/16] 0.0, 128
    %1836 = vxpose.xlu0.b32.cont [6/16] 0.0, 128
    %1837 = vxpose.xlu0.b32.cont [7/16] 0.0, 128
    %1838 = vxpose.xlu0.b32.cont [8/16] 0.0, 128
    %1839 = vxpose.xlu0.b32.cont [9/16] 0.0, 128
    %1840 = vxpose.xlu0.b32.cont [10/16] 0.0, 128
    %1841 = vxpose.xlu0.b32.cont [11/16] 0.0, 128
    %1842 = vxpose.xlu0.b32.cont [12/16] 0.0, 128
    %1843 = vxpose.xlu0.b32.cont [13/16] 0.0, 128
    %1844 = vxpose.xlu0.b32.cont [14/16] 0.0, 128
    %1845 = vxpose.xlu0.b32.cont [15/16] 0.0, 128
    %1846 = vxpose.xlu0.b32.end [16/16] 0.0, 128
    %v1847 = vpop.trf.xlu0
    %v1848 = vpop.trf.xlu0
    %v1849 = vpop.trf.xlu0
    %v1850 = vpop.trf.xlu0
    %v1851 = vpop.trf.xlu0
    %v1852 = vpop.trf.xlu0
    %v1853 = vpop.trf.xlu0
    %v1854 = vpop.trf.xlu0
    %v1855 = vpop.trf.xlu0
    %v1856 = vpop.trf.xlu0
    %v1857 = vpop.trf.xlu0
    %v1858 = vpop.trf.xlu0
    %v1859 = vpop.trf.xlu0
    %v1860 = vpop.trf.xlu0
    %v1861 = vpop.trf.xlu0
    %v1862 = vpop.trf.xlu0
    %v1863 = vcombine.low %v855, %v919
    %v1865 = vunpack.c.l.s4 1983009808
    %v1866 = vunpack.c.0.s8 %v1865
    %v1867 = vlaneseq
    %v1868 = vshrl.u32 %v1867, 7
    %v1869 = vsub.s32 %v1866, %v1868
    %v1870 = vrot.slane %v1863, %v1869
    %v1871 = vcombine.low %v887, %v951
    %v1873 = vunpack.c.l.s4 1983009808
    %v1874 = vunpack.c.0.s8 %v1873
    %v1875 = vlaneseq
    %v1876 = vshrl.u32 %v1875, 7
    %v1877 = vsub.s32 %v1874, %v1876
    %v1878 = vrot.slane %v1871, %v1877
    %v1879 = vcombine.low %v983, %v1047
    %v1881 = vunpack.c.l.s4 1983009808
    %v1882 = vunpack.c.0.s8 %v1881
    %v1883 = vlaneseq
    %v1884 = vshrl.u32 %v1883, 7
    %v1885 = vsub.s32 %v1882, %v1884
    %v1886 = vrot.slane %v1879, %v1885
    %v1887 = vcombine.low %v1015, %v1079
    %v1889 = vunpack.c.l.s4 1983009808
    %v1890 = vunpack.c.0.s8 %v1889
    %v1891 = vlaneseq
    %v1892 = vshrl.u32 %v1891, 7
    %v1893 = vsub.s32 %v1890, %v1892
    %v1894 = vrot.slane %v1887, %v1893
    %v1895 = vcombine.low %v1870, %v1878
    %v1896 = vcombine.high %v1870, %v1878
    %v1898 = vunpack.c.l.s4 1934713408
    %v1899 = vunpack.c.0.s8 %v1898
    %v1900 = vlaneseq
    %v1901 = vshrl.u32 %v1900, 7
    %v1902 = vsub.s32 %v1899, %v1901
    %v1903 = vrot.slane %v1895, %v1902
    %v1905 = vunpack.c.l.s4 1934713408
    %v1906 = vunpack.c.0.s8 %v1905
    %v1907 = vlaneseq
    %v1908 = vshrl.u32 %v1907, 7
    %v1909 = vsub.s32 %v1906, %v1908
    %v1910 = vrot.slane %v1896, %v1909
    %v1911 = vcombine.low %v1886, %v1894
    %v1912 = vcombine.high %v1886, %v1894
    %v1914 = vunpack.c.l.s4 1934713408
    %v1915 = vunpack.c.0.s8 %v1914
    %v1916 = vlaneseq
    %v1917 = vshrl.u32 %v1916, 7
    %v1918 = vsub.s32 %v1915, %v1917
    %v1919 = vrot.slane %v1911, %v1918
    %v1921 = vunpack.c.l.s4 1934713408
    %v1922 = vunpack.c.0.s8 %v1921
    %v1923 = vlaneseq
    %v1924 = vshrl.u32 %v1923, 7
    %v1925 = vsub.s32 %v1922, %v1924
    %v1926 = vrot.slane %v1912, %v1925
    %v1927 = vcombine.low %v1903, %v1919
    %v1928 = vcombine.high %v1903, %v1919
    %v1929 = vcombine.low %v1910, %v1926
    %v1930 = vcombine.high %v1910, %v1926
    %v1931 = vcombine.low %v1111, %v1175
    %v1933 = vunpack.c.l.s4 1983009808
    %v1934 = vunpack.c.0.s8 %v1933
    %v1935 = vlaneseq
    %v1936 = vshrl.u32 %v1935, 7
    %v1937 = vsub.s32 %v1934, %v1936
    %v1938 = vrot.slane %v1931, %v1937
    %v1939 = vcombine.low %v1143, %v1207
    %v1941 = vunpack.c.l.s4 1983009808
    %v1942 = vunpack.c.0.s8 %v1941
    %v1943 = vlaneseq
    %v1944 = vshrl.u32 %v1943, 7
    %v1945 = vsub.s32 %v1942, %v1944
    %v1946 = vrot.slane %v1939, %v1945
    %v1947 = vcombine.low %v1239, %v1303
    %v1949 = vunpack.c.l.s4 1983009808
    %v1950 = vunpack.c.0.s8 %v1949
    %v1951 = vlaneseq
    %v1952 = vshrl.u32 %v1951, 7
    %v1953 = vsub.s32 %v1950, %v1952
    %v1954 = vrot.slane %v1947, %v1953
    %v1955 = vcombine.low %v1271, %v1335
    %v1957 = vunpack.c.l.s4 1983009808
    %v1958 = vunpack.c.0.s8 %v1957
    %v1959 = vlaneseq
    %v1960 = vshrl.u32 %v1959, 7
    %v1961 = vsub.s32 %v1958, %v1960
    %v1962 = vrot.slane %v1955, %v1961
    %v1963 = vcombine.low %v1938, %v1946
    %v1964 = vcombine.high %v1938, %v1946
    %v1966 = vunpack.c.l.s4 1934713408
    %v1967 = vunpack.c.0.s8 %v1966
    %v1968 = vlaneseq
    %v1969 = vshrl.u32 %v1968, 7
    %v1970 = vsub.s32 %v1967, %v1969
    %v1971 = vrot.slane %v1963, %v1970
    %v1973 = vunpack.c.l.s4 1934713408
    %v1974 = vunpack.c.0.s8 %v1973
    %v1975 = vlaneseq
    %v1976 = vshrl.u32 %v1975, 7
    %v1977 = vsub.s32 %v1974, %v1976
    %v1978 = vrot.slane %v1964, %v1977
    %v1979 = vcombine.low %v1954, %v1962
    %v1980 = vcombine.high %v1954, %v1962
    %v1982 = vunpack.c.l.s4 1934713408
    %v1983 = vunpack.c.0.s8 %v1982
    %v1984 = vlaneseq
    %v1985 = vshrl.u32 %v1984, 7
    %v1986 = vsub.s32 %v1983, %v1985
    %v1987 = vrot.slane %v1979, %v1986
    %v1989 = vunpack.c.l.s4 1934713408
    %v1990 = vunpack.c.0.s8 %v1989
    %v1991 = vlaneseq
    %v1992 = vshrl.u32 %v1991, 7
    %v1993 = vsub.s32 %v1990, %v1992
    %v1994 = vrot.slane %v1980, %v1993
    %v1995 = vcombine.low %v1971, %v1987
    %v1996 = vcombine.high %v1971, %v1987
    %v1997 = vcombine.low %v1978, %v1994
    %v1998 = vcombine.high %v1978, %v1994
    %v1999 = vcombine.low %v1367, %v1431
    %v2001 = vunpack.c.l.s4 1983009808
    %v2002 = vunpack.c.0.s8 %v2001
    %v2003 = vlaneseq
    %v2004 = vshrl.u32 %v2003, 7
    %v2005 = vsub.s32 %v2002, %v2004
    %v2006 = vrot.slane %v1999, %v2005
    %v2007 = vcombine.low %v1399, %v1463
    %v2009 = vunpack.c.l.s4 1983009808
    %v2010 = vunpack.c.0.s8 %v2009
    %v2011 = vlaneseq
    %v2012 = vshrl.u32 %v2011, 7
    %v2013 = vsub.s32 %v2010, %v2012
    %v2014 = vrot.slane %v2007, %v2013
    %v2015 = vcombine.low %v1495, %v1559
    %v2017 = vunpack.c.l.s4 1983009808
    %v2018 = vunpack.c.0.s8 %v2017
    %v2019 = vlaneseq
    %v2020 = vshrl.u32 %v2019, 7
    %v2021 = vsub.s32 %v2018, %v2020
    %v2022 = vrot.slane %v2015, %v2021
    %v2023 = vcombine.low %v1527, %v1591
    %v2025 = vunpack.c.l.s4 1983009808
    %v2026 = vunpack.c.0.s8 %v2025
    %v2027 = vlaneseq
    %v2028 = vshrl.u32 %v2027, 7
    %v2029 = vsub.s32 %v2026, %v2028
    %v2030 = vrot.slane %v2023, %v2029
    %v2031 = vcombine.low %v2006, %v2014
    %v2032 = vcombine.high %v2006, %v2014
    %v2034 = vunpack.c.l.s4 1934713408
    %v2035 = vunpack.c.0.s8 %v2034
    %v2036 = vlaneseq
    %v2037 = vshrl.u32 %v2036, 7
    %v2038 = vsub.s32 %v2035, %v2037
    %v2039 = vrot.slane %v2031, %v2038
    %v2041 = vunpack.c.l.s4 1934713408
    %v2042 = vunpack.c.0.s8 %v2041
    %v2043 = vlaneseq
    %v2044 = vshrl.u32 %v2043, 7
    %v2045 = vsub.s32 %v2042, %v2044
    %v2046 = vrot.slane %v2032, %v2045
    %v2047 = vcombine.low %v2022, %v2030
    %v2048 = vcombine.high %v2022, %v2030
    %v2050 = vunpack.c.l.s4 1934713408
    %v2051 = vunpack.c.0.s8 %v2050
    %v2052 = vlaneseq
    %v2053 = vshrl.u32 %v2052, 7
    %v2054 = vsub.s32 %v2051, %v2053
    %v2055 = vrot.slane %v2047, %v2054
    %v2057 = vunpack.c.l.s4 1934713408
    %v2058 = vunpack.c.0.s8 %v2057
    %v2059 = vlaneseq
    %v2060 = vshrl.u32 %v2059, 7
    %v2061 = vsub.s32 %v2058, %v2060
    %v2062 = vrot.slane %v2048, %v2061
    %v2063 = vcombine.low %v2039, %v2055
    %v2064 = vcombine.high %v2039, %v2055
    %v2065 = vcombine.low %v2046, %v2062
    %v2066 = vcombine.high %v2046, %v2062
    %v2067 = vcombine.low %v1623, %v1687
    %v2069 = vunpack.c.l.s4 1983009808
    %v2070 = vunpack.c.0.s8 %v2069
    %v2071 = vlaneseq
    %v2072 = vshrl.u32 %v2071, 7
    %v2073 = vsub.s32 %v2070, %v2072
    %v2074 = vrot.slane %v2067, %v2073
    %v2075 = vcombine.low %v1655, %v1719
    %v2077 = vunpack.c.l.s4 1983009808
    %v2078 = vunpack.c.0.s8 %v2077
    %v2079 = vlaneseq
    %v2080 = vshrl.u32 %v2079, 7
    %v2081 = vsub.s32 %v2078, %v2080
    %v2082 = vrot.slane %v2075, %v2081
    %v2083 = vcombine.low %v1751, %v1815
    %v2085 = vunpack.c.l.s4 1983009808
    %v2086 = vunpack.c.0.s8 %v2085
    %v2087 = vlaneseq
    %v2088 = vshrl.u32 %v2087, 7
    %v2089 = vsub.s32 %v2086, %v2088
    %v2090 = vrot.slane %v2083, %v2089
    %v2091 = vcombine.low %v1783, %v1847
    %v2093 = vunpack.c.l.s4 1983009808
    %v2094 = vunpack.c.0.s8 %v2093
    %v2095 = vlaneseq
    %v2096 = vshrl.u32 %v2095, 7
    %v2097 = vsub.s32 %v2094, %v2096
    %v2098 = vrot.slane %v2091, %v2097
    %v2099 = vcombine.low %v2074, %v2082
    %v2100 = vcombine.high %v2074, %v2082
    %v2102 = vunpack.c.l.s4 1934713408
    %v2103 = vunpack.c.0.s8 %v2102
    %v2104 = vlaneseq
    %v2105 = vshrl.u32 %v2104, 7
    %v2106 = vsub.s32 %v2103, %v2105
    %v2107 = vrot.slane %v2099, %v2106
    %v2109 = vunpack.c.l.s4 1934713408
    %v2110 = vunpack.c.0.s8 %v2109
    %v2111 = vlaneseq
    %v2112 = vshrl.u32 %v2111, 7
    %v2113 = vsub.s32 %v2110, %v2112
    %v2114 = vrot.slane %v2100, %v2113
    %v2115 = vcombine.low %v2090, %v2098
    %v2116 = vcombine.high %v2090, %v2098
    %v2118 = vunpack.c.l.s4 1934713408
    %v2119 = vunpack.c.0.s8 %v2118
    %v2120 = vlaneseq
    %v2121 = vshrl.u32 %v2120, 7
    %v2122 = vsub.s32 %v2119, %v2121
    %v2123 = vrot.slane %v2115, %v2122
    %v2125 = vunpack.c.l.s4 1934713408
    %v2126 = vunpack.c.0.s8 %v2125
    %v2127 = vlaneseq
    %v2128 = vshrl.u32 %v2127, 7
    %v2129 = vsub.s32 %v2126, %v2128
    %v2130 = vrot.slane %v2116, %v2129
    %v2131 = vcombine.low %v2107, %v2123
    %v2132 = vcombine.high %v2107, %v2123
    %v2133 = vcombine.low %v2114, %v2130
    %v2134 = vcombine.high %v2114, %v2130
    %2135 = vxpose.xlu0.b32.start [1/16] %v23, 128
    %2136 = vxpose.xlu0.b32.cont [2/16] %v24, 128
    %2137 = vxpose.xlu0.b32.cont [3/16] %v25, 128
    %2138 = vxpose.xlu0.b32.cont [4/16] %v26, 128
    %2139 = vxpose.xlu0.b32.cont [5/16] 0.0, 128
    %2140 = vxpose.xlu0.b32.cont [6/16] 0.0, 128
    %2141 = vxpose.xlu0.b32.cont [7/16] 0.0, 128
    %2142 = vxpose.xlu0.b32.cont [8/16] 0.0, 128
    %2143 = vxpose.xlu0.b32.cont [9/16] 0.0, 128
    %2144 = vxpose.xlu0.b32.cont [10/16] 0.0, 128
    %2145 = vxpose.xlu0.b32.cont [11/16] 0.0, 128
    %2146 = vxpose.xlu0.b32.cont [12/16] 0.0, 128
    %2147 = vxpose.xlu0.b32.cont [13/16] 0.0, 128
    %2148 = vxpose.xlu0.b32.cont [14/16] 0.0, 128
    %2149 = vxpose.xlu0.b32.cont [15/16] 0.0, 128
    %2150 = vxpose.xlu0.b32.end [16/16] 0.0, 128
    %v2151 = vpop.trf.xlu0
    %v2152 = vpop.trf.xlu0
    %v2153 = vpop.trf.xlu0
    %v2154 = vpop.trf.xlu0
    %v2155 = vpop.trf.xlu0
    %v2156 = vpop.trf.xlu0
    %v2157 = vpop.trf.xlu0
    %v2158 = vpop.trf.xlu0
    %v2159 = vpop.trf.xlu0
    %v2160 = vpop.trf.xlu0
    %v2161 = vpop.trf.xlu0
    %v2162 = vpop.trf.xlu0
    %v2163 = vpop.trf.xlu0
    %v2164 = vpop.trf.xlu0
    %v2165 = vpop.trf.xlu0
    %v2166 = vpop.trf.xlu0
    %vm2167 = vcmask 261120
    %v2169 = vsel %vm2167, %v2151, 0
    %v2172 = vsel %vm2167, %v2152, 0
    %2174 = vmatprep.subr.mxu0 0.0
    %2175 = vmatpush1.msra.mxu0 %v1927
    %2176 = vmatprep.subr.mxu0 0.0
    %2177 = vmatpush1.msra.mxu0 %v1995
    %2178 = vmatprep.subr.mxu0 0.0
    %2179 = vmatpush1.msra.mxu0 %v2063
    %2180 = vmatprep.subr.mxu0 0.0
    %2181 = vmatpush1.msra.mxu0 %v2131
    %2182 = vmatprep.subr.mxu0 0.0
    %2183 = vmatpush1.msra.mxu0 0.0
    %2184 = vmatprep.subr.mxu0 0.0
    %2185 = vmatpush1.msra.mxu0 0.0
    %2186 = vmatprep.subr.mxu0 0.0
    %2187 = vmatpush1.msra.mxu0 0.0
    %2188 = vmatprep.subr.mxu0 0.0
    %2189 = vmatpush1.msra.mxu0 0.0
    %2190 = vmatprep.subr.mxu0 0.0
    %2191 = vmatpush1.msra.mxu0 0.0
    %2192 = vmatprep.subr.mxu0 0.0
    %2193 = vmatpush1.msra.mxu0 0.0
    %2194 = vmatprep.subr.mxu0 0.0
    %2195 = vmatpush1.msra.mxu0 0.0
    %2196 = vmatprep.subr.mxu0 0.0
    %2197 = vmatpush1.msra.mxu0 0.0
    %2198 = vmatprep.subr.mxu0 0.0
    %2199 = vmatpush1.msra.mxu0 0.0
    %2200 = vmatprep.subr.mxu0 0.0
    %2201 = vmatpush1.msra.mxu0 0.0
    %2202 = vmatprep.subr.mxu0 0.0
    %2203 = vmatpush1.msra.mxu0 0.0
    %2204 = vmatprep.subr.mxu0 0.0
    %2205 = vmatpush1.msra.mxu0 0.0
    %2206 = vmatprep.subr.mxu0 0.0
    %2207 = vmatpush1.msra.mxu0 0.0
    %2208 = vmatprep.subr.mxu0 0.0
    %2209 = vmatpush1.msra.mxu0 0.0
    %2210 = vmatprep.subr.mxu0 0.0
    %2211 = vmatpush1.msra.mxu0 0.0
    %2212 = vmatprep.subr.mxu0 0.0
    %2213 = vmatpush1.msra.mxu0 0.0
    %2214 = vmatprep.subr.mxu0 0.0
    %2215 = vmatpush1.msra.mxu0 0.0
    %2216 = vmatprep.subr.mxu0 0.0
    %2217 = vmatpush1.msra.mxu0 0.0
    %2218 = vmatprep.subr.mxu0 0.0
    %2219 = vmatpush1.msra.mxu0 0.0
    %2220 = vmatprep.subr.mxu0 0.0
    %2221 = vmatpush1.msra.mxu0 0.0
    %2222 = vmatprep.subr.mxu0 0.0
    %2223 = vmatpush1.msra.mxu0 0.0
    %2224 = vmatprep.subr.mxu0 0.0
    %2225 = vmatpush1.msra.mxu0 0.0
    %2226 = vmatprep.subr.mxu0 0.0
    %2227 = vmatpush1.msra.mxu0 0.0
    %2228 = vmatprep.subr.mxu0 0.0
    %2229 = vmatpush1.msra.mxu0 0.0
    %2230 = vmatprep.subr.mxu0 0.0
    %2231 = vmatpush1.msra.mxu0 0.0
    %2232 = vmatprep.subr.mxu0 0.0
    %2233 = vmatpush1.msra.mxu0 0.0
    %2234 = vmatprep.subr.mxu0 0.0
    %2235 = vmatpush1.msra.mxu0 0.0
    %2236 = vmatprep.subr.mxu0 0.0
    %2237 = vmatpush1.msra.mxu0 0.0
    %2238 = vmatprep.mubr.f32.mxu0 0.0
    %2239 = vmatmul.mubr.f32.gmra.mrb[0].mxu0 %v2169
    %v2240 = vpop.f32.mrb[0].mxu0
    %v2241 = vadd.f32 0.0, %v2240
    %v2242 = vpop.f32.mrb[0].mxu0
    %2243 = vmatprep.mubr.f32.mxu0 0.0
    %2244 = vmatmul.mubr.f32.gmra.mrb[0].mxu0 %v2172
    %v2245 = vpop.f32.mrb[0].mxu0
    %v2246 = vadd.f32 0.0, %v2245
    %v2247 = vpop.f32.mrb[0].mxu0
    %2248 = vdwg.mxu0
    %2249 = vxpose.xlu0.b32.start [1/16] %v27, 128
    %2250 = vxpose.xlu0.b32.cont [2/16] %v28, 128
    %2251 = vxpose.xlu0.b32.cont [3/16] %v29, 128
    %2252 = vxpose.xlu0.b32.cont [4/16] %v30, 128
    %2253 = vxpose.xlu0.b32.cont [5/16] 0.0, 128
    %2254 = vxpose.xlu0.b32.cont [6/16] 0.0, 128
    %2255 = vxpose.xlu0.b32.cont [7/16] 0.0, 128
    %2256 = vxpose.xlu0.b32.cont [8/16] 0.0, 128
    %2257 = vxpose.xlu0.b32.cont [9/16] 0.0, 128
    %2258 = vxpose.xlu0.b32.cont [10/16] 0.0, 128
    %2259 = vxpose.xlu0.b32.cont [11/16] 0.0, 128
    %2260 = vxpose.xlu0.b32.cont [12/16] 0.0, 128
    %2261 = vxpose.xlu0.b32.cont [13/16] 0.0, 128
    %2262 = vxpose.xlu0.b32.cont [14/16] 0.0, 128
    %2263 = vxpose.xlu0.b32.cont [15/16] 0.0, 128
    %2264 = vxpose.xlu0.b32.end [16/16] 0.0, 128
    %v2265 = vpop.trf.xlu0
    %v2266 = vpop.trf.xlu0
    %v2267 = vpop.trf.xlu0
    %v2268 = vpop.trf.xlu0
    %v2269 = vpop.trf.xlu0
    %v2270 = vpop.trf.xlu0
    %v2271 = vpop.trf.xlu0
    %v2272 = vpop.trf.xlu0
    %v2273 = vpop.trf.xlu0
    %v2274 = vpop.trf.xlu0
    %v2275 = vpop.trf.xlu0
    %v2276 = vpop.trf.xlu0
    %v2277 = vpop.trf.xlu0
    %v2278 = vpop.trf.xlu0
    %v2279 = vpop.trf.xlu0
    %v2280 = vpop.trf.xlu0
    %v2282 = vsel %vm2167, %v2265, 0
    %v2285 = vsel %vm2167, %v2266, 0
    %2287 = vmatprep.subr.mxu0 0.0
    %2288 = vmatpush1.msra.mxu0 %v1928
    %2289 = vmatprep.subr.mxu0 0.0
    %2290 = vmatpush1.msra.mxu0 %v1996
    %2291 = vmatprep.subr.mxu0 0.0
    %2292 = vmatpush1.msra.mxu0 %v2064
    %2293 = vmatprep.subr.mxu0 0.0
    %2294 = vmatpush1.msra.mxu0 %v2132
    %2295 = vmatprep.subr.mxu0 0.0
    %2296 = vmatpush1.msra.mxu0 0.0
    %2297 = vmatprep.subr.mxu0 0.0
    %2298 = vmatpush1.msra.mxu0 0.0
    %2299 = vmatprep.subr.mxu0 0.0
    %2300 = vmatpush1.msra.mxu0 0.0
    %2301 = vmatprep.subr.mxu0 0.0
    %2302 = vmatpush1.msra.mxu0 0.0
    %2303 = vmatprep.subr.mxu0 0.0
    %2304 = vmatpush1.msra.mxu0 0.0
    %2305 = vmatprep.subr.mxu0 0.0
    %2306 = vmatpush1.msra.mxu0 0.0
    %2307 = vmatprep.subr.mxu0 0.0
    %2308 = vmatpush1.msra.mxu0 0.0
    %2309 = vmatprep.subr.mxu0 0.0
    %2310 = vmatpush1.msra.mxu0 0.0
    %2311 = vmatprep.subr.mxu0 0.0
    %2312 = vmatpush1.msra.mxu0 0.0
    %2313 = vmatprep.subr.mxu0 0.0
    %2314 = vmatpush1.msra.mxu0 0.0
    %2315 = vmatprep.subr.mxu0 0.0
    %2316 = vmatpush1.msra.mxu0 0.0
    %2317 = vmatprep.subr.mxu0 0.0
    %2318 = vmatpush1.msra.mxu0 0.0
    %2319 = vmatprep.subr.mxu0 0.0
    %2320 = vmatpush1.msra.mxu0 0.0
    %2321 = vmatprep.subr.mxu0 0.0
    %2322 = vmatpush1.msra.mxu0 0.0
    %2323 = vmatprep.subr.mxu0 0.0
    %2324 = vmatpush1.msra.mxu0 0.0
    %2325 = vmatprep.subr.mxu0 0.0
    %2326 = vmatpush1.msra.mxu0 0.0
    %2327 = vmatprep.subr.mxu0 0.0
    %2328 = vmatpush1.msra.mxu0 0.0
    %2329 = vmatprep.subr.mxu0 0.0
    %2330 = vmatpush1.msra.mxu0 0.0
    %2331 = vmatprep.subr.mxu0 0.0
    %2332 = vmatpush1.msra.mxu0 0.0
    %2333 = vmatprep.subr.mxu0 0.0
    %2334 = vmatpush1.msra.mxu0 0.0
    %2335 = vmatprep.subr.mxu0 0.0
    %2336 = vmatpush1.msra.mxu0 0.0
    %2337 = vmatprep.subr.mxu0 0.0
    %2338 = vmatpush1.msra.mxu0 0.0
    %2339 = vmatprep.subr.mxu0 0.0
    %2340 = vmatpush1.msra.mxu0 0.0
    %2341 = vmatprep.subr.mxu0 0.0
    %2342 = vmatpush1.msra.mxu0 0.0
    %2343 = vmatprep.subr.mxu0 0.0
    %2344 = vmatpush1.msra.mxu0 0.0
    %2345 = vmatprep.subr.mxu0 0.0
    %2346 = vmatpush1.msra.mxu0 0.0
    %2347 = vmatprep.subr.mxu0 0.0
    %2348 = vmatpush1.msra.mxu0 0.0
    %2349 = vmatprep.subr.mxu0 0.0
    %2350 = vmatpush1.msra.mxu0 0.0
    %2351 = vmatprep.mubr.f32.mxu0 0.0
    %2352 = vmatmul.mubr.f32.gmra.mrb[0].mxu0 %v2282
    %v2353 = vpop.f32.mrb[0].mxu0
    %v2354 = vadd.f32 0.0, %v2353
    %v2355 = vpop.f32.mrb[0].mxu0
    %2356 = vmatprep.mubr.f32.mxu0 0.0
    %2357 = vmatmul.mubr.f32.gmra.mrb[0].mxu0 %v2285
    %v2358 = vpop.f32.mrb[0].mxu0
    %v2359 = vadd.f32 0.0, %v2358
    %v2360 = vpop.f32.mrb[0].mxu0
    %2361 = vdwg.mxu0
    %2362 = vxpose.xlu0.b32.start [1/16] %v31, 128
    %2363 = vxpose.xlu0.b32.cont [2/16] %v32, 128
    %2364 = vxpose.xlu0.b32.cont [3/16] %v33, 128
    %2365 = vxpose.xlu0.b32.cont [4/16] %v34, 128
    %2366 = vxpose.xlu0.b32.cont [5/16] 0.0, 128
    %2367 = vxpose.xlu0.b32.cont [6/16] 0.0, 128
    %2368 = vxpose.xlu0.b32.cont [7/16] 0.0, 128
    %2369 = vxpose.xlu0.b32.cont [8/16] 0.0, 128
    %2370 = vxpose.xlu0.b32.cont [9/16] 0.0, 128
    %2371 = vxpose.xlu0.b32.cont [10/16] 0.0, 128
    %2372 = vxpose.xlu0.b32.cont [11/16] 0.0, 128
    %2373 = vxpose.xlu0.b32.cont [12/16] 0.0, 128
    %2374 = vxpose.xlu0.b32.cont [13/16] 0.0, 128
    %2375 = vxpose.xlu0.b32.cont [14/16] 0.0, 128
    %2376 = vxpose.xlu0.b32.cont [15/16] 0.0, 128
    %2377 = vxpose.xlu0.b32.end [16/16] 0.0, 128
    %v2378 = vpop.trf.xlu0
    %v2379 = vpop.trf.xlu0
    %v2380 = vpop.trf.xlu0
    %v2381 = vpop.trf.xlu0
    %v2382 = vpop.trf.xlu0
    %v2383 = vpop.trf.xlu0
    %v2384 = vpop.trf.xlu0
    %v2385 = vpop.trf.xlu0
    %v2386 = vpop.trf.xlu0
    %v2387 = vpop.trf.xlu0
    %v2388 = vpop.trf.xlu0
    %v2389 = vpop.trf.xlu0
    %v2390 = vpop.trf.xlu0
    %v2391 = vpop.trf.xlu0
    %v2392 = vpop.trf.xlu0
    %v2393 = vpop.trf.xlu0
    %v2395 = vsel %vm2167, %v2378, 0
    %v2398 = vsel %vm2167, %v2379, 0
    %2400 = vmatprep.subr.mxu0 0.0
    %2401 = vmatpush1.msra.mxu0 %v1929
    %2402 = vmatprep.subr.mxu0 0.0
    %2403 = vmatpush1.msra.mxu0 %v1997
    %2404 = vmatprep.subr.mxu0 0.0
    %2405 = vmatpush1.msra.mxu0 %v2065
    %2406 = vmatprep.subr.mxu0 0.0
    %2407 = vmatpush1.msra.mxu0 %v2133
    %2408 = vmatprep.subr.mxu0 0.0
    %2409 = vmatpush1.msra.mxu0 0.0
    %2410 = vmatprep.subr.mxu0 0.0
    %2411 = vmatpush1.msra.mxu0 0.0
    %2412 = vmatprep.subr.mxu0 0.0
    %2413 = vmatpush1.msra.mxu0 0.0
    %2414 = vmatprep.subr.mxu0 0.0
    %2415 = vmatpush1.msra.mxu0 0.0
    %2416 = vmatprep.subr.mxu0 0.0
    %2417 = vmatpush1.msra.mxu0 0.0
    %2418 = vmatprep.subr.mxu0 0.0
    %2419 = vmatpush1.msra.mxu0 0.0
    %2420 = vmatprep.subr.mxu0 0.0
    %2421 = vmatpush1.msra.mxu0 0.0
    %2422 = vmatprep.subr.mxu0 0.0
    %2423 = vmatpush1.msra.mxu0 0.0
    %2424 = vmatprep.subr.mxu0 0.0
    %2425 = vmatpush1.msra.mxu0 0.0
    %2426 = vmatprep.subr.mxu0 0.0
    %2427 = vmatpush1.msra.mxu0 0.0
    %2428 = vmatprep.subr.mxu0 0.0
    %2429 = vmatpush1.msra.mxu0 0.0
    %2430 = vmatprep.subr.mxu0 0.0
    %2431 = vmatpush1.msra.mxu0 0.0
    %2432 = vmatprep.subr.mxu0 0.0
    %2433 = vmatpush1.msra.mxu0 0.0
    %2434 = vmatprep.subr.mxu0 0.0
    %2435 = vmatpush1.msra.mxu0 0.0
    %2436 = vmatprep.subr.mxu0 0.0
    %2437 = vmatpush1.msra.mxu0 0.0
    %2438 = vmatprep.subr.mxu0 0.0
    %2439 = vmatpush1.msra.mxu0 0.0
    %2440 = vmatprep.subr.mxu0 0.0
    %2441 = vmatpush1.msra.mxu0 0.0
    %2442 = vmatprep.subr.mxu0 0.0
    %2443 = vmatpush1.msra.mxu0 0.0
    %2444 = vmatprep.subr.mxu0 0.0
    %2445 = vmatpush1.msra.mxu0 0.0
    %2446 = vmatprep.subr.mxu0 0.0
    %2447 = vmatpush1.msra.mxu0 0.0
    %2448 = vmatprep.subr.mxu0 0.0
    %2449 = vmatpush1.msra.mxu0 0.0
    %2450 = vmatprep.subr.mxu0 0.0
    %2451 = vmatpush1.msra.mxu0 0.0
    %2452 = vmatprep.subr.mxu0 0.0
    %2453 = vmatpush1.msra.mxu0 0.0
    %2454 = vmatprep.subr.mxu0 0.0
    %2455 = vmatpush1.msra.mxu0 0.0
    %2456 = vmatprep.subr.mxu0 0.0
    %2457 = vmatpush1.msra.mxu0 0.0
    %2458 = vmatprep.subr.mxu0 0.0
    %2459 = vmatpush1.msra.mxu0 0.0
    %2460 = vmatprep.subr.mxu0 0.0
    %2461 = vmatpush1.msra.mxu0 0.0
    %2462 = vmatprep.subr.mxu0 0.0
    %2463 = vmatpush1.msra.mxu0 0.0
    %2464 = vmatprep.mubr.f32.mxu0 0.0
    %2465 = vmatmul.mubr.f32.gmra.mrb[0].mxu0 %v2395
    %v2466 = vpop.f32.mrb[0].mxu0
    %v2467 = vadd.f32 0.0, %v2466
    %v2468 = vpop.f32.mrb[0].mxu0
    %2469 = vmatprep.mubr.f32.mxu0 0.0
    %2470 = vmatmul.mubr.f32.gmra.mrb[0].mxu0 %v2398
    %v2471 = vpop.f32.mrb[0].mxu0
    %v2472 = vadd.f32 0.0, %v2471
    %v2473 = vpop.f32.mrb[0].mxu0
    %2474 = vdwg.mxu0
    %2475 = vxpose.xlu0.b32.start [1/16] %v35, 128
    %2476 = vxpose.xlu0.b32.cont [2/16] %v36, 128
    %2477 = vxpose.xlu0.b32.cont [3/16] %v37, 128
    %2478 = vxpose.xlu0.b32.cont [4/16] %v38, 128
    %2479 = vxpose.xlu0.b32.cont [5/16] 0.0, 128
    %2480 = vxpose.xlu0.b32.cont [6/16] 0.0, 128
    %2481 = vxpose.xlu0.b32.cont [7/16] 0.0, 128
    %2482 = vxpose.xlu0.b32.cont [8/16] 0.0, 128
    %2483 = vxpose.xlu0.b32.cont [9/16] 0.0, 128
    %2484 = vxpose.xlu0.b32.cont [10/16] 0.0, 128
    %2485 = vxpose.xlu0.b32.cont [11/16] 0.0, 128
    %2486 = vxpose.xlu0.b32.cont [12/16] 0.0, 128
    %2487 = vxpose.xlu0.b32.cont [13/16] 0.0, 128
    %2488 = vxpose.xlu0.b32.cont [14/16] 0.0, 128
    %2489 = vxpose.xlu0.b32.cont [15/16] 0.0, 128
    %2490 = vxpose.xlu0.b32.end [16/16] 0.0, 128
    %v2491 = vpop.trf.xlu0
    %v2492 = vpop.trf.xlu0
    %v2493 = vpop.trf.xlu0
    %v2494 = vpop.trf.xlu0
    %v2495 = vpop.trf.xlu0
    %v2496 = vpop.trf.xlu0
    %v2497 = vpop.trf.xlu0
    %v2498 = vpop.trf.xlu0
    %v2499 = vpop.trf.xlu0
    %v2500 = vpop.trf.xlu0
    %v2501 = vpop.trf.xlu0
    %v2502 = vpop.trf.xlu0
    %v2503 = vpop.trf.xlu0
    %v2504 = vpop.trf.xlu0
    %v2505 = vpop.trf.xlu0
    %v2506 = vpop.trf.xlu0
    %v2508 = vsel %vm2167, %v2491, 0
    %v2511 = vsel %vm2167, %v2492, 0
    %2513 = vmatprep.subr.mxu0 0.0
    %2514 = vmatpush1.msra.mxu0 %v1930
    %2515 = vmatprep.subr.mxu0 0.0
    %2516 = vmatpush1.msra.mxu0 %v1998
    %2517 = vmatprep.subr.mxu0 0.0
    %2518 = vmatpush1.msra.mxu0 %v2066
    %2519 = vmatprep.subr.mxu0 0.0
    %2520 = vmatpush1.msra.mxu0 %v2134
    %2521 = vmatprep.subr.mxu0 0.0
    %2522 = vmatpush1.msra.mxu0 0.0
    %2523 = vmatprep.subr.mxu0 0.0
    %2524 = vmatpush1.msra.mxu0 0.0
    %2525 = vmatprep.subr.mxu0 0.0
    %2526 = vmatpush1.msra.mxu0 0.0
    %2527 = vmatprep.subr.mxu0 0.0
    %2528 = vmatpush1.msra.mxu0 0.0
    %2529 = vmatprep.subr.mxu0 0.0
    %2530 = vmatpush1.msra.mxu0 0.0
    %2531 = vmatprep.subr.mxu0 0.0
    %2532 = vmatpush1.msra.mxu0 0.0
    %2533 = vmatprep.subr.mxu0 0.0
    %2534 = vmatpush1.msra.mxu0 0.0
    %2535 = vmatprep.subr.mxu0 0.0
    %2536 = vmatpush1.msra.mxu0 0.0
    %2537 = vmatprep.subr.mxu0 0.0
    %2538 = vmatpush1.msra.mxu0 0.0
    %2539 = vmatprep.subr.mxu0 0.0
    %2540 = vmatpush1.msra.mxu0 0.0
    %2541 = vmatprep.subr.mxu0 0.0
    %2542 = vmatpush1.msra.mxu0 0.0
    %2543 = vmatprep.subr.mxu0 0.0
    %2544 = vmatpush1.msra.mxu0 0.0
    %2545 = vmatprep.subr.mxu0 0.0
    %2546 = vmatpush1.msra.mxu0 0.0
    %2547 = vmatprep.subr.mxu0 0.0
    %2548 = vmatpush1.msra.mxu0 0.0
    %2549 = vmatprep.subr.mxu0 0.0
    %2550 = vmatpush1.msra.mxu0 0.0
    %2551 = vmatprep.subr.mxu0 0.0
    %2552 = vmatpush1.msra.mxu0 0.0
    %2553 = vmatprep.subr.mxu0 0.0
    %2554 = vmatpush1.msra.mxu0 0.0
    %2555 = vmatprep.subr.mxu0 0.0
    %2556 = vmatpush1.msra.mxu0 0.0
    %2557 = vmatprep.subr.mxu0 0.0
    %2558 = vmatpush1.msra.mxu0 0.0
    %2559 = vmatprep.subr.mxu0 0.0
    %2560 = vmatpush1.msra.mxu0 0.0
    %2561 = vmatprep.subr.mxu0 0.0
    %2562 = vmatpush1.msra.mxu0 0.0
    %2563 = vmatprep.subr.mxu0 0.0
    %2564 = vmatpush1.msra.mxu0 0.0
    %2565 = vmatprep.subr.mxu0 0.0
    %2566 = vmatpush1.msra.mxu0 0.0
    %2567 = vmatprep.subr.mxu0 0.0
    %2568 = vmatpush1.msra.mxu0 0.0
    %2569 = vmatprep.subr.mxu0 0.0
    %2570 = vmatpush1.msra.mxu0 0.0
    %2571 = vmatprep.subr.mxu0 0.0
    %2572 = vmatpush1.msra.mxu0 0.0
    %2573 = vmatprep.subr.mxu0 0.0
    %2574 = vmatpush1.msra.mxu0 0.0
    %2575 = vmatprep.subr.mxu0 0.0
    %2576 = vmatpush1.msra.mxu0 0.0
    %2577 = vmatprep.mubr.f32.mxu0 0.0
    %2578 = vmatmul.mubr.f32.gmra.mrb[0].mxu0 %v2508
    %v2579 = vpop.f32.mrb[0].mxu0
    %v2580 = vadd.f32 0.0, %v2579
    %v2581 = vpop.f32.mrb[0].mxu0
    %2582 = vmatprep.mubr.f32.mxu0 0.0
    %2583 = vmatmul.mubr.f32.gmra.mrb[0].mxu0 %v2511
    %v2584 = vpop.f32.mrb[0].mxu0
    %v2585 = vadd.f32 0.0, %v2584
    %v2586 = vpop.f32.mrb[0].mxu0
    %2587 = vdwg.mxu0
    %2588 = vxpose.xlu0.b32.start [1/16] %v2241, 128
    %2589 = vxpose.xlu0.b32.cont [2/16] %v2246, 128
    %2590 = vxpose.xlu0.b32.cont [3/16] 0.0, 128
    %2591 = vxpose.xlu0.b32.cont [4/16] 0.0, 128
    %2592 = vxpose.xlu0.b32.cont [5/16] 0.0, 128
    %2593 = vxpose.xlu0.b32.cont [6/16] 0.0, 128
    %2594 = vxpose.xlu0.b32.cont [7/16] 0.0, 128
    %2595 = vxpose.xlu0.b32.cont [8/16] 0.0, 128
    %2596 = vxpose.xlu0.b32.cont [9/16] 0.0, 128
    %2597 = vxpose.xlu0.b32.cont [10/16] 0.0, 128
    %2598 = vxpose.xlu0.b32.cont [11/16] 0.0, 128
    %2599 = vxpose.xlu0.b32.cont [12/16] 0.0, 128
    %2600 = vxpose.xlu0.b32.cont [13/16] 0.0, 128
    %2601 = vxpose.xlu0.b32.cont [14/16] 0.0, 128
    %2602 = vxpose.xlu0.b32.cont [15/16] 0.0, 128
    %2603 = vxpose.xlu0.b32.end [16/16] 0.0, 128
    %v2604 = vpop.trf.xlu0
    %v2605 = vpop.trf.xlu0
    %v2606 = vpop.trf.xlu0
    %v2607 = vpop.trf.xlu0
    %v2608 = vpop.trf.xlu0
    %v2609 = vpop.trf.xlu0
    %v2610 = vpop.trf.xlu0
    %v2611 = vpop.trf.xlu0
    %v2612 = vpop.trf.xlu0
    %v2613 = vpop.trf.xlu0
    %v2614 = vpop.trf.xlu0
    %v2615 = vpop.trf.xlu0
    %v2616 = vpop.trf.xlu0
    %v2617 = vpop.trf.xlu0
    %v2618 = vpop.trf.xlu0
    %v2619 = vpop.trf.xlu0
    %2620 = vxpose.xlu0.b32.start [1/16] %v2354, 128
    %2621 = vxpose.xlu0.b32.cont [2/16] %v2359, 128
    %2622 = vxpose.xlu0.b32.cont [3/16] 0.0, 128
    %2623 = vxpose.xlu0.b32.cont [4/16] 0.0, 128
    %2624 = vxpose.xlu0.b32.cont [5/16] 0.0, 128
    %2625 = vxpose.xlu0.b32.cont [6/16] 0.0, 128
    %2626 = vxpose.xlu0.b32.cont [7/16] 0.0, 128
    %2627 = vxpose.xlu0.b32.cont [8/16] 0.0, 128
    %2628 = vxpose.xlu0.b32.cont [9/16] 0.0, 128
    %2629 = vxpose.xlu0.b32.cont [10/16] 0.0, 128
    %2630 = vxpose.xlu0.b32.cont [11/16] 0.0, 128
    %2631 = vxpose.xlu0.b32.cont [12/16] 0.0, 128
    %2632 = vxpose.xlu0.b32.cont [13/16] 0.0, 128
    %2633 = vxpose.xlu0.b32.cont [14/16] 0.0, 128
    %2634 = vxpose.xlu0.b32.cont [15/16] 0.0, 128
    %2635 = vxpose.xlu0.b32.end [16/16] 0.0, 128
    %v2636 = vpop.trf.xlu0
    %v2637 = vpop.trf.xlu0
    %v2638 = vpop.trf.xlu0
    %v2639 = vpop.trf.xlu0
    %v2640 = vpop.trf.xlu0
    %v2641 = vpop.trf.xlu0
    %v2642 = vpop.trf.xlu0
    %v2643 = vpop.trf.xlu0
    %v2644 = vpop.trf.xlu0
    %v2645 = vpop.trf.xlu0
    %v2646 = vpop.trf.xlu0
    %v2647 = vpop.trf.xlu0
    %v2648 = vpop.trf.xlu0
    %v2649 = vpop.trf.xlu0
    %v2650 = vpop.trf.xlu0
    %v2651 = vpop.trf.xlu0
    %2652 = vxpose.xlu0.b32.start [1/16] %v2467, 128
    %2653 = vxpose.xlu0.b32.cont [2/16] %v2472, 128
    %2654 = vxpose.xlu0.b32.cont [3/16] 0.0, 128
    %2655 = vxpose.xlu0.b32.cont [4/16] 0.0, 128
    %2656 = vxpose.xlu0.b32.cont [5/16] 0.0, 128
    %2657 = vxpose.xlu0.b32.cont [6/16] 0.0, 128
    %2658 = vxpose.xlu0.b32.cont [7/16] 0.0, 128
    %2659 = vxpose.xlu0.b32.cont [8/16] 0.0, 128
    %2660 = vxpose.xlu0.b32.cont [9/16] 0.0, 128
    %2661 = vxpose.xlu0.b32.cont [10/16] 0.0, 128
    %2662 = vxpose.xlu0.b32.cont [11/16] 0.0, 128
    %2663 = vxpose.xlu0.b32.cont [12/16] 0.0, 128
    %2664 = vxpose.xlu0.b32.cont [13/16] 0.0, 128
    %2665 = vxpose.xlu0.b32.cont [14/16] 0.0, 128
    %2666 = vxpose.xlu0.b32.cont [15/16] 0.0, 128
    %2667 = vxpose.xlu0.b32.end [16/16] 0.0, 128
    %v2668 = vpop.trf.xlu0
    %v2669 = vpop.trf.xlu0
    %v2670 = vpop.trf.xlu0
    %v2671 = vpop.trf.xlu0
    %v2672 = vpop.trf.xlu0
    %v2673 = vpop.trf.xlu0
    %v2674 = vpop.trf.xlu0
    %v2675 = vpop.trf.xlu0
    %v2676 = vpop.trf.xlu0
    %v2677 = vpop.trf.xlu0
    %v2678 = vpop.trf.xlu0
    %v2679 = vpop.trf.xlu0
    %v2680 = vpop.trf.xlu0
    %v2681 = vpop.trf.xlu0
    %v2682 = vpop.trf.xlu0
    %v2683 = vpop.trf.xlu0
    %2684 = vxpose.xlu0.b32.start [1/16] %v2580, 128
    %2685 = vxpose.xlu0.b32.cont [2/16] %v2585, 128
    %2686 = vxpose.xlu0.b32.cont [3/16] 0.0, 128
    %2687 = vxpose.xlu0.b32.cont [4/16] 0.0, 128
    %2688 = vxpose.xlu0.b32.cont [5/16] 0.0, 128
    %2689 = vxpose.xlu0.b32.cont [6/16] 0.0, 128
    %2690 = vxpose.xlu0.b32.cont [7/16] 0.0, 128
    %2691 = vxpose.xlu0.b32.cont [8/16] 0.0, 128
    %2692 = vxpose.xlu0.b32.cont [9/16] 0.0, 128
    %2693 = vxpose.xlu0.b32.cont [10/16] 0.0, 128
    %2694 = vxpose.xlu0.b32.cont [11/16] 0.0, 128
    %2695 = vxpose.xlu0.b32.cont [12/16] 0.0, 128
    %2696 = vxpose.xlu0.b32.cont [13/16] 0.0, 128
    %2697 = vxpose.xlu0.b32.cont [14/16] 0.0, 128
    %2698 = vxpose.xlu0.b32.cont [15/16] 0.0, 128
    %2699 = vxpose.xlu0.b32.end [16/16] 0.0, 128
    %v2700 = vpop.trf.xlu0
    %v2701 = vpop.trf.xlu0
    %v2702 = vpop.trf.xlu0
    %v2703 = vpop.trf.xlu0
    %v2704 = vpop.trf.xlu0
    %v2705 = vpop.trf.xlu0
    %v2706 = vpop.trf.xlu0
    %v2707 = vpop.trf.xlu0
    %v2708 = vpop.trf.xlu0
    %v2709 = vpop.trf.xlu0
    %v2710 = vpop.trf.xlu0
    %v2711 = vpop.trf.xlu0
    %v2712 = vpop.trf.xlu0
    %v2713 = vpop.trf.xlu0
    %v2714 = vpop.trf.xlu0
    %v2715 = vpop.trf.xlu0
    %v2716 = vcombine.low %v2604, %v2668
    %v2717 = vcombine.high %v2604, %v2668
    %v2719 = vunpack.c.l.s4 1983009808
    %v2720 = vunpack.c.0.s8 %v2719
    %v2721 = vlaneseq
    %v2722 = vshrl.u32 %v2721, 7
    %v2723 = vsub.s32 %v2720, %v2722
    %v2724 = vrot.slane %v2716, %v2723
    %v2726 = vunpack.c.l.s4 1983009808
    %v2727 = vunpack.c.0.s8 %v2726
    %v2728 = vlaneseq
    %v2729 = vshrl.u32 %v2728, 7
    %v2730 = vsub.s32 %v2727, %v2729
    %v2731 = vrot.slane %v2717, %v2730
    %v2732 = vcombine.low %v2636, %v2700
    %v2733 = vcombine.high %v2636, %v2700
    %v2735 = vunpack.c.l.s4 1983009808
    %v2736 = vunpack.c.0.s8 %v2735
    %v2737 = vlaneseq
    %v2738 = vshrl.u32 %v2737, 7
    %v2739 = vsub.s32 %v2736, %v2738
    %v2740 = vrot.slane %v2732, %v2739
    %v2742 = vunpack.c.l.s4 1983009808
    %v2743 = vunpack.c.0.s8 %v2742
    %v2744 = vlaneseq
    %v2745 = vshrl.u32 %v2744, 7
    %v2746 = vsub.s32 %v2743, %v2745
    %v2747 = vrot.slane %v2733, %v2746
    %v2748 = vcombine.low %v2724, %v2740
    %v2749 = vcombine.high %v2724, %v2740
    %v2751 = vunpack.c.l.s4 1934713408
    %v2752 = vunpack.c.0.s8 %v2751
    %v2753 = vlaneseq
    %v2754 = vshrl.u32 %v2753, 7
    %v2755 = vsub.s32 %v2752, %v2754
    %v2756 = vrot.slane %v2748, %v2755
    %v2758 = vunpack.c.l.s4 1934713408
    %v2759 = vunpack.c.0.s8 %v2758
    %v2760 = vlaneseq
    %v2761 = vshrl.u32 %v2760, 7
    %v2762 = vsub.s32 %v2759, %v2761
    %v2763 = vrot.slane %v2749, %v2762
    %v2764 = vcombine.low %v2731, %v2747
    %v2765 = vcombine.high %v2731, %v2747
    %v2767 = vunpack.c.l.s4 1934713408
    %v2768 = vunpack.c.0.s8 %v2767
    %v2769 = vlaneseq
    %v2770 = vshrl.u32 %v2769, 7
    %v2771 = vsub.s32 %v2768, %v2770
    %v2772 = vrot.slane %v2764, %v2771
    %v2774 = vunpack.c.l.s4 1934713408
    %v2775 = vunpack.c.0.s8 %v2774
    %v2776 = vlaneseq
    %v2777 = vshrl.u32 %v2776, 7
    %v2778 = vsub.s32 %v2775, %v2777
    %v2779 = vrot.slane %v2765, %v2778
    %v2780 = vcombine.high %v2756, 0.0
    %v2781 = vcombine.high %v2763, 0.0
    %v2782 = vcombine.high %v2772, 0.0
    %v2783 = vcombine.high %v2779, 0.0
    %v2784 = vld [vmem:[%s2] sm:$0xf]
    %v2785 = vadd.f32 %v2756, %v2784
    %v2786 = vadd.f32 %v2780, %v2784
    %v2787 = vadd.f32 %v2763, %v2784
    %v2788 = vadd.f32 %v2781, %v2784
    %v2789 = vadd.f32 %v2772, %v2784
    %v2790 = vadd.f32 %v2782, %v2784
    %v2791 = vadd.f32 %v2779, %v2784
    %v2792 = vadd.f32 %v2783, %v2784
    %v2793 = vcombine.low %v2785, %v2787
    %v2795 = vunpack.c.l.s4 1983009808
    %v2796 = vunpack.c.0.s8 %v2795
    %v2797 = vlaneseq
    %v2798 = vshrl.u32 %v2797, 7
    %v2799 = vsub.s32 %v2796, %v2798
    %v2800 = vrot.slane %v2793, %v2799
    %v2801 = vcombine.low %v2786, %v2788
    %v2803 = vunpack.c.l.s4 1983009808
    %v2804 = vunpack.c.0.s8 %v2803
    %v2805 = vlaneseq
    %v2806 = vshrl.u32 %v2805, 7
    %v2807 = vsub.s32 %v2804, %v2806
    %v2808 = vrot.slane %v2801, %v2807
    %v2809 = vcombine.low %v2789, %v2791
    %v2811 = vunpack.c.l.s4 1983009808
    %v2812 = vunpack.c.0.s8 %v2811
    %v2813 = vlaneseq
    %v2814 = vshrl.u32 %v2813, 7
    %v2815 = vsub.s32 %v2812, %v2814
    %v2816 = vrot.slane %v2809, %v2815
    %v2817 = vcombine.low %v2790, %v2792
    %v2819 = vunpack.c.l.s4 1983009808
    %v2820 = vunpack.c.0.s8 %v2819
    %v2821 = vlaneseq
    %v2822 = vshrl.u32 %v2821, 7
    %v2823 = vsub.s32 %v2820, %v2822
    %v2824 = vrot.slane %v2817, %v2823
    %v2825 = vcombine.low %v2800, %v2808
    %v2826 = vcombine.high %v2800, %v2808
    %v2828 = vunpack.c.l.s4 1934713408
    %v2829 = vunpack.c.0.s8 %v2828
    %v2830 = vlaneseq
    %v2831 = vshrl.u32 %v2830, 7
    %v2832 = vsub.s32 %v2829, %v2831
    %v2833 = vrot.slane %v2825, %v2832
    %v2835 = vunpack.c.l.s4 1934713408
    %v2836 = vunpack.c.0.s8 %v2835
    %v2837 = vlaneseq
    %v2838 = vshrl.u32 %v2837, 7
    %v2839 = vsub.s32 %v2836, %v2838
    %v2840 = vrot.slane %v2826, %v2839
    %v2841 = vcombine.low %v2816, %v2824
    %v2842 = vcombine.high %v2816, %v2824
    %v2844 = vunpack.c.l.s4 1934713408
    %v2845 = vunpack.c.0.s8 %v2844
    %v2846 = vlaneseq
    %v2847 = vshrl.u32 %v2846, 7
    %v2848 = vsub.s32 %v2845, %v2847
    %v2849 = vrot.slane %v2841, %v2848
    %v2851 = vunpack.c.l.s4 1934713408
    %v2852 = vunpack.c.0.s8 %v2851
    %v2853 = vlaneseq
    %v2854 = vshrl.u32 %v2853, 7
    %v2855 = vsub.s32 %v2852, %v2854
    %v2856 = vrot.slane %v2842, %v2855
    %v2857 = vcombine.low %v2833, %v2849
    %v2858 = vcombine.high %v2833, %v2849
    %v2859 = vcombine.low %v2840, %v2856
    %v2860 = vcombine.high %v2840, %v2856
    %2862 = vrot.lane.b32.xlu0 %v2858, 16
    %v2863 = vpop.permute.xlu0 %2862
    %2866 = vrot.lane.b32.xlu0 %v2859, 32
    %v2867 = vpop.permute.xlu0 %2866
    %2870 = vrot.lane.b32.xlu0 %v2860, 48
    %v2871 = vpop.permute.xlu0 %2870
    %vm2873 = vcmask 130048
    %v2874 = vsel %vm2873, %v2857, %v2863
    %v2875 = vsel %vm2167, %v2874, %v2867
    %vm2876 = vcmask 392192
    %v2877 = vsel %vm2876, %v2875, %v2871
    %vm2878 = vcmask 523264
    %2879 = vst.msk [vmem:[#allocation2] sm:$0xff] %vm2878, %v2877
    // Predicated region
    $region14: #{tpu_custom_call.1} parent=1 // pred_check
      _
    $region15: #{tpu_custom_call.1} parent=1 // pred_check_branch
      %2881 = sbr.rel (0) target = $region17
    $region16: #{tpu_custom_call.1} parent=1 // pred_region
      %s2883 = ssub.s32 128, 128
      %2884 = vsyncadd [#allocation3], %s2883
      %s2886 = sshll.u32 [#allocation2], 4
      %s2887 = int_to_ptr.vmem [resolvable:$true] %s2886
      %2889 = dma.vmem_to_hbm [thread:$0]  %s2887, 128, %s3, [#allocation3]
    $region17: #{tpu_custom_call.1} parent=1 // pred_fallthru
      _
    // Predicated region
    $region18: #{tpu_custom_call.1} parent=1 // pred_check
      _
    $region19: #{tpu_custom_call.1} parent=1 // pred_check_branch
      %2891 = sbr.rel (0) target = $region21
    $region20: #{tpu_custom_call.1} parent=1 // pred_region
      %2892 = dma.done [#allocation3], 128
    $region21: #{tpu_custom_call.1} parent=1 // pred_fallthru
      _
    %2893 = vsyncpa [#allocation3], 1

</llo_original>
